<compile_context>
chip_gen: v7x
topology: tpu7x:2x2x1
jax: 0.10.0
libtpu: 0.0.40
codegen_flags: <defaults>
</compile_context>

<pallas_src>
import jax
import jax.numpy as jnp
from jax.experimental import pallas as pl
from jax.experimental.pallas import tpu as pltpu

CHNLS = 20
H, W = 4, 12                       # conv kernel (1,2), no pad -> output 4 x 11
S = H * (W - 1)                    # 44 spatial positions after the conv
FEAT = CHNLS * S                   # 880 = fc1 input features


def _round_up(n, m):
    return ((n + m - 1) // m) * m


def mlp_kernel(xl_ref, xr_ref, cw0_ref, cw1_ref, cb_ref,
               w1_ref, b1_ref, w2_ref, b2_ref,
               w3_ref, b3_ref, w4_ref, b4_ref, out_ref):
    # Conv2d(1, 20, (1,2)) + ReLU. In-kernel 20x channel replication of the
    # [TB, 44] left/right taps; feature order == torch.flatten => c*44 + h*11 + w.
    xl = jnp.tile(xl_ref[...], (1, CHNLS))                       # [TB, 880]
    xr = jnp.tile(xr_ref[...], (1, CHNLS))                       # [TB, 880]
    h0 = jnp.maximum(xl * cw0_ref[...] + xr * cw1_ref[...] + cb_ref[...], 0.0)

    # fc1 + ReLU (bf16 MXU inputs, f32 accumulation).
    h1 = jnp.maximum(
        jnp.dot(h0.astype(jnp.bfloat16), w1_ref[...],
                preferred_element_type=jnp.float32) + b1_ref[...], 0.0)
    # F.dropout(p=0.2, training=False) == identity.
    # fc2 + ReLU
    h2 = jnp.maximum(
        jnp.dot(h1.astype(jnp.bfloat16), w2_ref[...],
                preferred_element_type=jnp.float32) + b2_ref[...], 0.0)
    # fc3 + ReLU
    h3 = jnp.maximum(
        jnp.dot(h2.astype(jnp.bfloat16), w3_ref[...],
                preferred_element_type=jnp.float32) + b3_ref[...], 0.0)
    # fc4 (64 -> 1): VPU multiply + lane reduction instead of a 1-wide MXU pass.
    out_ref[...] = (jnp.sum(h3 * w4_ref[...], axis=-1, keepdims=True)
                    + b4_ref[...])


def init_params(key):
    ks = jax.random.split(key, 10)

    def lin(kw, kb, fan_in, fan_out):
        s = 1.0 / jnp.sqrt(jnp.float32(fan_in))
        w = jax.random.uniform(kw, (fan_out, fan_in), jnp.float32, -s, s)  # torch [out,in]
        b = jax.random.uniform(kb, (fan_out,), jnp.float32, -s, s)
        return w, b

    conv_w = jax.random.uniform(ks[0], (CHNLS, 1, 1, 2), jnp.float32, -0.5, 0.5)
    conv_b = jax.random.uniform(ks[1], (CHNLS,), jnp.float32, -0.5, 0.5)
    fc1_w, fc1_b = lin(ks[2], ks[3], FEAT, 512)
    fc2_w, fc2_b = lin(ks[4], ks[5], 512, 128)
    fc3_w, fc3_b = lin(ks[6], ks[7], 128, 64)
    fc4_w, fc4_b = lin(ks[8], ks[9], 64, 1)
    return dict(conv_w=conv_w, conv_b=conv_b,
                fc1_w=fc1_w, fc1_b=fc1_b, fc2_w=fc2_w, fc2_b=fc2_b,
                fc3_w=fc3_w, fc3_b=fc3_b, fc4_w=fc4_w, fc4_b=fc4_b)


def mlp_forward(x, params, *, tb=256):
    """x: NCHW [B, 1, 4, 12] float32 (same layout as the PyTorch module)."""
    B = x.shape[0]
    tb = min(tb, _round_up(max(B, 1), 8))          # small batches: one small tile
    b_pad = _round_up(B, tb)
    n_tiles = b_pad // tb

    # im2col taps for the (1,2) conv, flattened over (h, w): [B, 44] each.
    xl = x[:, 0, :, :-1].reshape(B, S)
    xr = x[:, 0, :, 1:].reshape(B, S)
    if b_pad != B:
        xl = jnp.pad(xl, ((0, b_pad - B), (0, 0)))
        xr = jnp.pad(xr, ((0, b_pad - B), (0, 0)))

    # Conv weights/bias replicated across the 44 spatial positions (feature
    # order c*44 + s), kept as tiny VMEM-resident [1, 880] rows.
    cw, cb = params["conv_w"], params["conv_b"]
    cw0 = jnp.repeat(cw[:, 0, 0, 0], S).reshape(1, FEAT)
    cw1 = jnp.repeat(cw[:, 0, 0, 1], S).reshape(1, FEAT)
    cbr = jnp.repeat(cb, S).reshape(1, FEAT)

    # Torch Linear: y = x @ W.T + b with W [out, in]; pre-transpose, bf16 for MXU.
    w1 = params["fc1_w"].T.astype(jnp.bfloat16)    # [880, 512]
    w2 = params["fc2_w"].T.astype(jnp.bfloat16)    # [512, 128]
    w3 = params["fc3_w"].T.astype(jnp.bfloat16)    # [128, 64]
    b1 = params["fc1_b"].reshape(1, -1)
    b2 = params["fc2_b"].reshape(1, -1)
    b3 = params["fc3_b"].reshape(1, -1)
    w4 = params["fc4_w"].reshape(1, -1)            # [1, 64] row for the VPU reduce
    b4 = params["fc4_b"].reshape(1, 1)

    args = (xl, xr, cw0, cw1, cbr, w1, b1, w2, b2, w3, b3, w4, b4)

    const = lambda i: (0, 0)                       # weights: fetched once, resident
    batched = lambda i: (i, 0)
    in_specs = [
        pl.BlockSpec((tb, S), batched),            # xl
        pl.BlockSpec((tb, S), batched),            # xr
        pl.BlockSpec((1, FEAT), const),            # cw0
        pl.BlockSpec((1, FEAT), const),            # cw1
        pl.BlockSpec((1, FEAT), const),            # cb
        pl.BlockSpec((FEAT, 512), const),          # w1
        pl.BlockSpec((1, 512), const),             # b1
        pl.BlockSpec((512, 128), const),           # w2
        pl.BlockSpec((1, 128), const),             # b2
        pl.BlockSpec((128, 64), const),            # w3
        pl.BlockSpec((1, 64), const),              # b3
        pl.BlockSpec((1, 64), const),              # w4
        pl.BlockSpec((1, 1), const),               # b4
    ]
    out_spec = pl.BlockSpec((tb, 1), batched)

    flops = int(2 * b_pad * (FEAT * 512 + 512 * 128 + 128 * 64 + 64)
                + 4 * b_pad * FEAT)
    bytes_accessed = int(
        2 * b_pad * S * 4                                   # xl, xr
        + 3 * FEAT * 4                                      # conv rows
        + (FEAT * 512 + 512 * 128 + 128 * 64) * 2           # bf16 fc weights
        + (512 + 128 + 64 + 64 + 1) * 4                     # biases + w4
        + b_pad * 4)                                        # output

    out = pl.pallas_call(
        mlp_kernel,
        out_shape=jax.ShapeDtypeStruct((b_pad, 1), jnp.float32),
        grid=(n_tiles,),
        in_specs=in_specs,
        out_specs=out_spec,
        compiler_params=pltpu.CompilerParams(
            dimension_semantics=("parallel",),
            vmem_limit_bytes=32 * 1024 * 1024),
        cost_estimate=pl.CostEstimate(
            flops=flops, transcendentals=0, bytes_accessed=bytes_accessed),
    )(*args)
    return out[:B]


def mlp_reference(x, params):
    """Pure-JAX f32 reference reproducing the PyTorch eval-mode forward."""
    B = x.shape[0]
    cw, cb = params["conv_w"], params["conv_b"]
    xl = x[:, 0, :, :-1]                           # [B, 4, 11]
    xr = x[:, 0, :, 1:]                            # [B, 4, 11]
    conv = (xl[:, None] * cw[None, :, 0, 0, 0, None, None]
            + xr[:, None] * cw[None, :, 0, 0, 1, None, None]
            + cb[None, :, None, None])             # [B, 20, 4, 11]
    h = jnp.maximum(conv, 0.0).reshape(B, FEAT)    # torch.flatten(x, 1)
    h = jnp.maximum(h @ params["fc1_w"].T + params["fc1_b"], 0.0)
    h = jnp.maximum(h @ params["fc2_w"].T + params["fc2_b"], 0.0)
    h = jnp.maximum(h @ params["fc3_w"].T + params["fc3_b"], 0.0)
    return h @ params["fc4_w"].T + params["fc4_b"]


if __name__ == "__main__":
    key = jax.random.PRNGKey(0)
    kx, kx2, kp = jax.random.split(key, 3)
    params = init_params(kp)

    # Small canonical case (single tile) and a multi-tile case with a ragged
    # final tile (exercises the batch grid + padding path).
    for B, kk in ((2, kx), (300, kx2)):
        x = jax.random.normal(kk, (B, 1, H, W), jnp.float32)   # NCHW, like PyTorch
        out = jax.block_until_ready(mlp_forward(x, params))
        ref = jax.block_until_ready(mlp_reference(x, params))
        assert out.shape == (B, 1), out.shape
        # bf16 MXU inputs (f32 accumulation) -> slightly looser tolerance.
        assert jnp.allclose(out, ref, rtol=2e-2, atol=2e-2), (out, ref)

    print("KERNEL_OK")
</pallas_src>

<mosaic_0001>
module attributes {stable_mosaic.version = 11 : i64} {
  func.func @mlp_kernel(%arg0: i32, %arg1: memref<8x44xf32, #tpu.memory_space<vmem>>, %arg2: memref<8x44xf32, #tpu.memory_space<vmem>>, %arg3: memref<1x880xf32, #tpu.memory_space<vmem>>, %arg4: memref<1x880xf32, #tpu.memory_space<vmem>>, %arg5: memref<1x880xf32, #tpu.memory_space<vmem>>, %arg6: memref<880x512xbf16, #tpu.memory_space<vmem>>, %arg7: memref<1x512xf32, #tpu.memory_space<vmem>>, %arg8: memref<512x128xbf16, #tpu.memory_space<vmem>>, %arg9: memref<1x128xf32, #tpu.memory_space<vmem>>, %arg10: memref<128x64xbf16, #tpu.memory_space<vmem>>, %arg11: memref<1x64xf32, #tpu.memory_space<vmem>>, %arg12: memref<1x64xf32, #tpu.memory_space<vmem>>, %arg13: memref<1x1xf32, #tpu.memory_space<vmem>>, %arg14: memref<8x1xf32, #tpu.memory_space<vmem>>) attributes {dimension_semantics = [#tpu.dimension_semantics<parallel>], iteration_bounds = array<i64: 1>, scalar_prefetch = 0 : i64, scratch_operands = 0 : i64, tpu.core_type = #tpu.core_type<tc>, window_params = [{transform_indices = @transform_0, window_bounds = array<i64: 8, 44>}, {transform_indices = @transform_1, window_bounds = array<i64: 8, 44>}, {pipeline_mode = #tpu.pipeline_mode<synchronous>, transform_indices = @transform_2, window_bounds = array<i64: 1, 880>}, {pipeline_mode = #tpu.pipeline_mode<synchronous>, transform_indices = @transform_3, window_bounds = array<i64: 1, 880>}, {pipeline_mode = #tpu.pipeline_mode<synchronous>, transform_indices = @transform_4, window_bounds = array<i64: 1, 880>}, {pipeline_mode = #tpu.pipeline_mode<synchronous>, transform_indices = @transform_5, window_bounds = array<i64: 880, 512>}, {pipeline_mode = #tpu.pipeline_mode<synchronous>, transform_indices = @transform_6, window_bounds = array<i64: 1, 512>}, {pipeline_mode = #tpu.pipeline_mode<synchronous>, transform_indices = @transform_7, window_bounds = array<i64: 512, 128>}, {pipeline_mode = #tpu.pipeline_mode<synchronous>, transform_indices = @transform_8, window_bounds = array<i64: 1, 128>}, {pipeline_mode = #tpu.pipeline_mode<synchronous>, transform_indices = @transform_9, window_bounds = array<i64: 128, 64>}, {pipeline_mode = #tpu.pipeline_mode<synchronous>, transform_indices = @transform_10, window_bounds = array<i64: 1, 64>}, {pipeline_mode = #tpu.pipeline_mode<synchronous>, transform_indices = @transform_11, window_bounds = array<i64: 1, 64>}, {pipeline_mode = #tpu.pipeline_mode<synchronous>, transform_indices = @transform_12, window_bounds = array<i64: 1, 1>}, {transform_indices = @transform_13, window_bounds = array<i64: 8, 1>}]} {
    %c0 = arith.constant 0 : index
    %c0_0 = arith.constant 0 : index
    %0 = vector.load %arg1[%c0, %c0_0] : memref<8x44xf32, #tpu.memory_space<vmem>>, vector<8x44xf32>
    %1 = tpu.concatenate %0, %0, %0, %0, %0, %0, %0, %0, %0, %0, %0, %0, %0, %0, %0, %0, %0, %0, %0, %0 in 1 : vector<8x44xf32>, vector<8x44xf32>, vector<8x44xf32>, vector<8x44xf32>, vector<8x44xf32>, vector<8x44xf32>, vector<8x44xf32>, vector<8x44xf32>, vector<8x44xf32>, vector<8x44xf32>, vector<8x44xf32>, vector<8x44xf32>, vector<8x44xf32>, vector<8x44xf32>, vector<8x44xf32>, vector<8x44xf32>, vector<8x44xf32>, vector<8x44xf32>, vector<8x44xf32>, vector<8x44xf32> -> vector<8x880xf32>
    %c0_1 = arith.constant 0 : index
    %c0_2 = arith.constant 0 : index
    %2 = vector.load %arg2[%c0_1, %c0_2] : memref<8x44xf32, #tpu.memory_space<vmem>>, vector<8x44xf32>
    %3 = tpu.concatenate %2, %2, %2, %2, %2, %2, %2, %2, %2, %2, %2, %2, %2, %2, %2, %2, %2, %2, %2, %2 in 1 : vector<8x44xf32>, vector<8x44xf32>, vector<8x44xf32>, vector<8x44xf32>, vector<8x44xf32>, vector<8x44xf32>, vector<8x44xf32>, vector<8x44xf32>, vector<8x44xf32>, vector<8x44xf32>, vector<8x44xf32>, vector<8x44xf32>, vector<8x44xf32>, vector<8x44xf32>, vector<8x44xf32>, vector<8x44xf32>, vector<8x44xf32>, vector<8x44xf32>, vector<8x44xf32>, vector<8x44xf32> -> vector<8x880xf32>
    %c0_3 = arith.constant 0 : index
    %c0_4 = arith.constant 0 : index
    %4 = vector.load %arg3[%c0_3, %c0_4] : memref<1x880xf32, #tpu.memory_space<vmem>>, vector<1x880xf32>
    %5 = vector.broadcast %4 : vector<1x880xf32> to vector<8x880xf32>
    %6 = arith.mulf %1, %5 : vector<8x880xf32>
    %c0_5 = arith.constant 0 : index
    %c0_6 = arith.constant 0 : index
    %7 = vector.load %arg4[%c0_5, %c0_6] : memref<1x880xf32, #tpu.memory_space<vmem>>, vector<1x880xf32>
    %8 = vector.broadcast %7 : vector<1x880xf32> to vector<8x880xf32>
    %9 = arith.mulf %3, %8 : vector<8x880xf32>
    %10 = arith.addf %6, %9 : vector<8x880xf32>
    %c0_7 = arith.constant 0 : index
    %c0_8 = arith.constant 0 : index
    %11 = vector.load %arg5[%c0_7, %c0_8] : memref<1x880xf32, #tpu.memory_space<vmem>>, vector<1x880xf32>
    %12 = vector.broadcast %11 : vector<1x880xf32> to vector<8x880xf32>
    %13 = arith.addf %10, %12 : vector<8x880xf32>
    %cst = arith.constant 0.000000e+00 : f32
    %14 = vector.broadcast %cst : f32 to vector<8x880xf32>
    %15 = arith.maximumf %13, %14 : vector<8x880xf32>
    %16 = arith.truncf %15 : vector<8x880xf32> to vector<8x880xbf16>
    %c0_9 = arith.constant 0 : index
    %c0_10 = arith.constant 0 : index
    %17 = vector.load %arg6[%c0_9, %c0_10] : memref<880x512xbf16, #tpu.memory_space<vmem>>, vector<880x512xbf16>
    %cst_11 = arith.constant dense<0.000000e+00> : vector<8x512xf32>
    %18 = tpu.matmul %16, %17, %cst_11 {dimension_numbers = #tpu.dot_dimension_numbers<[1], [0], [0], [1], [0, 0, 1, 1], [], []>} : vector<8x880xbf16>, vector<880x512xbf16>, vector<8x512xf32> -> vector<8x512xf32>
    %c0_12 = arith.constant 0 : index
    %c0_13 = arith.constant 0 : index
    %19 = vector.load %arg7[%c0_12, %c0_13] : memref<1x512xf32, #tpu.memory_space<vmem>>, vector<1x512xf32>
    %20 = vector.broadcast %19 : vector<1x512xf32> to vector<8x512xf32>
    %21 = arith.addf %18, %20 : vector<8x512xf32>
    %cst_14 = arith.constant 0.000000e+00 : f32
    %22 = vector.broadcast %cst_14 : f32 to vector<8x512xf32>
    %23 = arith.maximumf %21, %22 : vector<8x512xf32>
    %24 = arith.truncf %23 : vector<8x512xf32> to vector<8x512xbf16>
    %c0_15 = arith.constant 0 : index
    %c0_16 = arith.constant 0 : index
    %25 = vector.load %arg8[%c0_15, %c0_16] : memref<512x128xbf16, #tpu.memory_space<vmem>>, vector<512x128xbf16>
    %cst_17 = arith.constant dense<0.000000e+00> : vector<8x128xf32>
    %26 = tpu.matmul %24, %25, %cst_17 {dimension_numbers = #tpu.dot_dimension_numbers<[1], [0], [0], [1], [0, 0, 1, 1], [], []>} : vector<8x512xbf16>, vector<512x128xbf16>, vector<8x128xf32> -> vector<8x128xf32>
    %c0_18 = arith.constant 0 : index
    %c0_19 = arith.constant 0 : index
    %27 = vector.load %arg9[%c0_18, %c0_19] : memref<1x128xf32, #tpu.memory_space<vmem>>, vector<1x128xf32>
    %28 = vector.broadcast %27 : vector<1x128xf32> to vector<8x128xf32>
    %29 = arith.addf %26, %28 : vector<8x128xf32>
    %cst_20 = arith.constant 0.000000e+00 : f32
    %30 = vector.broadcast %cst_20 : f32 to vector<8x128xf32>
    %31 = arith.maximumf %29, %30 : vector<8x128xf32>
    %32 = arith.truncf %31 : vector<8x128xf32> to vector<8x128xbf16>
    %c0_21 = arith.constant 0 : index
    %c0_22 = arith.constant 0 : index
    %33 = vector.load %arg10[%c0_21, %c0_22] : memref<128x64xbf16, #tpu.memory_space<vmem>>, vector<128x64xbf16>
    %cst_23 = arith.constant dense<0.000000e+00> : vector<8x64xf32>
    %34 = tpu.matmul %32, %33, %cst_23 {dimension_numbers = #tpu.dot_dimension_numbers<[1], [0], [0], [1], [0, 0, 1, 1], [], []>} : vector<8x128xbf16>, vector<128x64xbf16>, vector<8x64xf32> -> vector<8x64xf32>
    %c0_24 = arith.constant 0 : index
    %c0_25 = arith.constant 0 : index
    %35 = vector.load %arg11[%c0_24, %c0_25] : memref<1x64xf32, #tpu.memory_space<vmem>>, vector<1x64xf32>
    %36 = vector.broadcast %35 : vector<1x64xf32> to vector<8x64xf32>
    %37 = arith.addf %34, %36 : vector<8x64xf32>
    %cst_26 = arith.constant 0.000000e+00 : f32
    %38 = vector.broadcast %cst_26 : f32 to vector<8x64xf32>
    %39 = arith.maximumf %37, %38 : vector<8x64xf32>
    %c0_27 = arith.constant 0 : index
    %c0_28 = arith.constant 0 : index
    %40 = vector.load %arg12[%c0_27, %c0_28] : memref<1x64xf32, #tpu.memory_space<vmem>>, vector<1x64xf32>
    %41 = vector.broadcast %40 : vector<1x64xf32> to vector<8x64xf32>
    %42 = arith.mulf %39, %41 : vector<8x64xf32>
    %cst_29 = arith.constant dense<0.000000e+00> : vector<8xf32>
    %43 = vector.multi_reduction <add>, %42, %cst_29 [1] : vector<8x64xf32> to vector<8xf32>
    %44 = vector.shape_cast %43 : vector<8xf32> to vector<8x1xf32>
    %c0_30 = arith.constant 0 : index
    %c0_31 = arith.constant 0 : index
    %45 = vector.load %arg13[%c0_30, %c0_31] : memref<1x1xf32, #tpu.memory_space<vmem>>, vector<1x1xf32>
    %46 = vector.broadcast %45 : vector<1x1xf32> to vector<8x1xf32>
    %47 = arith.addf %44, %46 : vector<8x1xf32>
    %c0_32 = arith.constant 0 : index
    %c0_33 = arith.constant 0 : index
    %48 = vector.load %arg14[%c0_32, %c0_33] : memref<8x1xf32, #tpu.memory_space<vmem>>, vector<8x1xf32>
    tpu.vector_store %arg14[%c0_32, %c0_33], %47 {strides = array<i32>} : memref<8x1xf32, #tpu.memory_space<vmem>>, vector<8x1xf32>,
    return
  }
  func.func @transform_0(%arg0: i32) -> (i32, i32) {
    %c0_i32 = arith.constant 0 : i32
    %c0_i32_0 = arith.constant 0 : i32
    return %arg0, %c0_i32 : i32, i32
  }
  func.func @transform_1(%arg0: i32) -> (i32, i32) {
    %c0_i32 = arith.constant 0 : i32
    %c0_i32_0 = arith.constant 0 : i32
    return %arg0, %c0_i32 : i32, i32
  }
  func.func @transform_2(%arg0: i32) -> (i32, i32) {
    %c0_i32 = arith.constant 0 : i32
    %c0_i32_0 = arith.constant 0 : i32
    %c0_i32_1 = arith.constant 0 : i32
    return %c0_i32, %c0_i32_0 : i32, i32
  }
  func.func @transform_3(%arg0: i32) -> (i32, i32) {
    %c0_i32 = arith.constant 0 : i32
    %c0_i32_0 = arith.constant 0 : i32
    %c0_i32_1 = arith.constant 0 : i32
    return %c0_i32, %c0_i32_0 : i32, i32
  }
  func.func @transform_4(%arg0: i32) -> (i32, i32) {
    %c0_i32 = arith.constant 0 : i32
    %c0_i32_0 = arith.constant 0 : i32
    %c0_i32_1 = arith.constant 0 : i32
    return %c0_i32, %c0_i32_0 : i32, i32
  }
  func.func @transform_5(%arg0: i32) -> (i32, i32) {
    %c0_i32 = arith.constant 0 : i32
    %c0_i32_0 = arith.constant 0 : i32
    %c0_i32_1 = arith.constant 0 : i32
    return %c0_i32, %c0_i32_0 : i32, i32
  }
  func.func @transform_6(%arg0: i32) -> (i32, i32) {
    %c0_i32 = arith.constant 0 : i32
    %c0_i32_0 = arith.constant 0 : i32
    %c0_i32_1 = arith.constant 0 : i32
    return %c0_i32, %c0_i32_0 : i32, i32
  }
  func.func @transform_7(%arg0: i32) -> (i32, i32) {
    %c0_i32 = arith.constant 0 : i32
    %c0_i32_0 = arith.constant 0 : i32
    %c0_i32_1 = arith.constant 0 : i32
    return %c0_i32, %c0_i32_0 : i32, i32
  }
  func.func @transform_8(%arg0: i32) -> (i32, i32) {
    %c0_i32 = arith.constant 0 : i32
    %c0_i32_0 = arith.constant 0 : i32
    %c0_i32_1 = arith.constant 0 : i32
    return %c0_i32, %c0_i32_0 : i32, i32
  }
  func.func @transform_9(%arg0: i32) -> (i32, i32) {
    %c0_i32 = arith.constant 0 : i32
    %c0_i32_0 = arith.constant 0 : i32
    %c0_i32_1 = arith.constant 0 : i32
    return %c0_i32, %c0_i32_0 : i32, i32
  }
  func.func @transform_10(%arg0: i32) -> (i32, i32) {
    %c0_i32 = arith.constant 0 : i32
    %c0_i32_0 = arith.constant 0 : i32
    %c0_i32_1 = arith.constant 0 : i32
    return %c0_i32, %c0_i32_0 : i32, i32
  }
  func.func @transform_11(%arg0: i32) -> (i32, i32) {
    %c0_i32 = arith.constant 0 : i32
    %c0_i32_0 = arith.constant 0 : i32
    %c0_i32_1 = arith.constant 0 : i32
    return %c0_i32, %c0_i32_0 : i32, i32
  }
  func.func @transform_12(%arg0: i32) -> (i32, i32) {
    %c0_i32 = arith.constant 0 : i32
    %c0_i32_0 = arith.constant 0 : i32
    %c0_i32_1 = arith.constant 0 : i32
    return %c0_i32, %c0_i32_0 : i32, i32
  }
  func.func @transform_13(%arg0: i32) -> (i32, i32) {
    %c0_i32 = arith.constant 0 : i32
    %c0_i32_0 = arith.constant 0 : i32
    return %arg0, %c0_i32 : i32, i32
  }
}

</mosaic_0001>

<llo_original>
// kernel: tpu_custom_call.1
$region0: #{tpu_custom_call.1}
  #allocation0 [shape = 'u32[]', space=smem, size = 0x4, offset = 0x4, fixed_abs, tag = 'smem constant byte address 0x4 - core index']
  #allocation1 [shape = 'u32[144,128]{1,0:T(1,128)}', space=vmem, size = 0x12000, scoped, tag = 'internal scratch']
  #allocation2 [shape = 'f32[1,1]{1,0:T(1,128)S(1)}', space=vmem, size = 0x200, scoped, tag = 'scoped memory for tpu_custom_call.1']
  %s0 = inlined_call_operand.vmem [shape: f32[8,44], index: 0, kind: input, shape index: {}]
  %s1 = inlined_call_operand.vmem [shape: f32[8,44], index: 1, kind: input, shape index: {}]
  %s2 = inlined_call_operand.vmem [shape: f32[1,880], index: 2, kind: input, shape index: {}]
  %s3 = inlined_call_operand.vmem [shape: f32[1,880], index: 3, kind: input, shape index: {}]
  %s4 = inlined_call_operand.vmem [shape: f32[1,880], index: 4, kind: input, shape index: {}]
  %s5 = inlined_call_operand.hbm [shape: bf16[880,512], index: 5, kind: input, shape index: {}]
  %s6 = inlined_call_operand.vmem [shape: f32[1,512], index: 6, kind: input, shape index: {}]
  %s7 = inlined_call_operand.hbm [shape: bf16[512,128], index: 7, kind: input, shape index: {}]
  %s8 = inlined_call_operand.vmem [shape: f32[1,128], index: 8, kind: input, shape index: {}]
  %s9 = inlined_call_operand.vmem [shape: bf16[128,64], index: 9, kind: input, shape index: {}]
  %s10 = inlined_call_operand.vmem [shape: f32[1,64], index: 10, kind: input, shape index: {}]
  %s11 = inlined_call_operand.vmem [shape: f32[1,64], index: 11, kind: input, shape index: {}]
  %s12 = inlined_call_operand.<no memory space> [shape: f32[1,1], index: 12, kind: input, shape index: {}]
  %s13 = inlined_call_operand.vmem [shape: f32[8,1], index: 13, kind: output, shape index: {}]
  %s14 = sld [smem:[#allocation0]]
  $region70: #{tpu_custom_call.1} parent=0
    _
  %s16 = ssub.s32 1, %s14
  %s17 = scalar_select 0, %s16, %s14
  %v18 = vstv %s12
  %19 = vst [vmem:[#allocation2] sm:$0x1] %v18
  $region1: #{tpu_custom_call.1} parent=0
    #allocation3 [shape = 'u8[901120]{0}', space=vmem, size = 0xdc000, scoped, tag = 'input window, operand 5, single buffered']
    #allocation4 [shape = 's32[1]{0}', space=sflag, size = 0x4, scoped, tag = 'scoped memory for tpu_custom_call.1']
    #allocation5 [shape = 'u8[131072]{0}', space=vmem, size = 0x20000, scoped, tag = 'input window, operand 7, single buffered']
    #allocation6 [shape = 's32[1]{0}', space=sflag, size = 0x4, scoped, tag = 'scoped memory for tpu_custom_call.1']
    %20 = vsyncpa [#allocation4], 0
    %21 = vsyncpa [#allocation6], 0
    // Predicated region
    $region2: #{tpu_custom_call.1} parent=1 // pred_check
      _
    $region3: #{tpu_custom_call.1} parent=1 // pred_check_branch
      %23 = sbr.rel (0) target = $region5
    $region4: #{tpu_custom_call.1} parent=1 // pred_region
      _
    $region5: #{tpu_custom_call.1} parent=1 // pred_fallthru
      _
    // Predicated region
    $region6: #{tpu_custom_call.1} parent=1 // pred_check
      _
    $region7: #{tpu_custom_call.1} parent=1 // pred_check_branch
      %25 = sbr.rel (0) target = $region9
    $region8: #{tpu_custom_call.1} parent=1 // pred_region
      _
    $region9: #{tpu_custom_call.1} parent=1 // pred_fallthru
      _
    // Predicated region
    $region10: #{tpu_custom_call.1} parent=1 // pred_check
      _
    $region11: #{tpu_custom_call.1} parent=1 // pred_check_branch
      %27 = sbr.rel (0) target = $region13
    $region12: #{tpu_custom_call.1} parent=1 // pred_region
      _
    $region13: #{tpu_custom_call.1} parent=1 // pred_fallthru
      _
    // Predicated region
    $region14: #{tpu_custom_call.1} parent=1 // pred_check
      _
    $region15: #{tpu_custom_call.1} parent=1 // pred_check_branch
      %29 = sbr.rel (0) target = $region17
    $region16: #{tpu_custom_call.1} parent=1 // pred_region
      _
    $region17: #{tpu_custom_call.1} parent=1 // pred_fallthru
      _
    // Predicated region
    $region18: #{tpu_custom_call.1} parent=1 // pred_check
      _
    $region19: #{tpu_custom_call.1} parent=1 // pred_check_branch
      %31 = sbr.rel (0) target = $region21
    $region20: #{tpu_custom_call.1} parent=1 // pred_region
      _
    $region21: #{tpu_custom_call.1} parent=1 // pred_fallthru
      _
    // Predicated region
    $region22: #{tpu_custom_call.1} parent=1 // pred_check
      _
    $region23: #{tpu_custom_call.1} parent=1 // pred_check_branch
      %33 = sbr.rel (0) target = $region25
    $region24: #{tpu_custom_call.1} parent=1 // pred_region
      %s35 = ssub.s32 28160, 28160
      %36 = vsyncadd [#allocation4], %s35
      %s37 = sshll.u32 [#allocation3], 4
      %s38 = int_to_ptr.vmem [resolvable:$true] %s37
      %43 = dma.hbm_to_vmem [thread:$0]  %s5, 28160, %s38, [#allocation4], 256, 256, 16
    $region25: #{tpu_custom_call.1} parent=1 // pred_fallthru
      _
    // Predicated region
    $region26: #{tpu_custom_call.1} parent=1 // pred_check
      _
    $region27: #{tpu_custom_call.1} parent=1 // pred_check_branch
      %45 = sbr.rel (0) target = $region29
    $region28: #{tpu_custom_call.1} parent=1 // pred_region
      _
    $region29: #{tpu_custom_call.1} parent=1 // pred_fallthru
      _
    // Predicated region
    $region30: #{tpu_custom_call.1} parent=1 // pred_check
      _
    $region31: #{tpu_custom_call.1} parent=1 // pred_check_branch
      %47 = sbr.rel (0) target = $region33
    $region32: #{tpu_custom_call.1} parent=1 // pred_region
      %s49 = ssub.s32 4096, 4096
      %50 = vsyncadd [#allocation6], %s49
      %s51 = sshll.u32 [#allocation5], 4
      %s52 = int_to_ptr.vmem [resolvable:$true] %s51
      %57 = dma.hbm_to_vmem [thread:$0]  %s7, 4096, %s52, [#allocation6], 64, 64, 4
    $region33: #{tpu_custom_call.1} parent=1 // pred_fallthru
      _
    // Predicated region
    $region34: #{tpu_custom_call.1} parent=1 // pred_check
      _
    $region35: #{tpu_custom_call.1} parent=1 // pred_check_branch
      %59 = sbr.rel (0) target = $region37
    $region36: #{tpu_custom_call.1} parent=1 // pred_region
      _
    $region37: #{tpu_custom_call.1} parent=1 // pred_fallthru
      _
    // Predicated region
    $region38: #{tpu_custom_call.1} parent=1 // pred_check
      _
    $region39: #{tpu_custom_call.1} parent=1 // pred_check_branch
      %61 = sbr.rel (0) target = $region41
    $region40: #{tpu_custom_call.1} parent=1 // pred_region
      _
    $region41: #{tpu_custom_call.1} parent=1 // pred_fallthru
      _
    // Predicated region
    $region42: #{tpu_custom_call.1} parent=1 // pred_check
      _
    $region43: #{tpu_custom_call.1} parent=1 // pred_check_branch
      %63 = sbr.rel (0) target = $region45
    $region44: #{tpu_custom_call.1} parent=1 // pred_region
      _
    $region45: #{tpu_custom_call.1} parent=1 // pred_fallthru
      _
    // Predicated region
    $region46: #{tpu_custom_call.1} parent=1 // pred_check
      _
    $region47: #{tpu_custom_call.1} parent=1 // pred_check_branch
      %65 = sbr.rel (0) target = $region49
    $region48: #{tpu_custom_call.1} parent=1 // pred_region
      _
    $region49: #{tpu_custom_call.1} parent=1 // pred_fallthru
      _
    // Predicated region
    $region50: #{tpu_custom_call.1} parent=1 // pred_check
      _
    $region51: #{tpu_custom_call.1} parent=1 // pred_check_branch
      %67 = sbr.rel (0) target = $region53
    $region52: #{tpu_custom_call.1} parent=1 // pred_region
      _
    $region53: #{tpu_custom_call.1} parent=1 // pred_fallthru
      _
    // Predicated region
    $region54: #{tpu_custom_call.1} parent=1 // pred_check
      _
    $region55: #{tpu_custom_call.1} parent=1 // pred_check_branch
      %69 = sbr.rel (0) target = $region57
    $region56: #{tpu_custom_call.1} parent=1 // pred_region
      %70 = dma.done [#allocation4], 28160
    $region57: #{tpu_custom_call.1} parent=1 // pred_fallthru
      _
    // Predicated region
    $region58: #{tpu_custom_call.1} parent=1 // pred_check
      _
    $region59: #{tpu_custom_call.1} parent=1 // pred_check_branch
      %72 = sbr.rel (0) target = $region61
    $region60: #{tpu_custom_call.1} parent=1 // pred_region
      %73 = dma.done [#allocation6], 4096
    $region61: #{tpu_custom_call.1} parent=1 // pred_fallthru
      _
    %v75 = vld [vmem:[%s0] sm:$0xff]
    %77 = vrot.lane.b32.xlu0 %v75, 44
    %v78 = vpop.permute.xlu0 %77
    %80 = vrot.lane.b32.xlu0 %v75, 88
    %v81 = vpop.permute.xlu0 %80
    %83 = vrot.lane.b32.xlu0 %v75, 4
    %v84 = vpop.permute.xlu0 %83
    %86 = vrot.lane.b32.xlu0 %v75, 48
    %v87 = vpop.permute.xlu0 %86
    %89 = vrot.lane.b32.xlu0 %v75, 92
    %v90 = vpop.permute.xlu0 %89
    %92 = vrot.lane.b32.xlu0 %v75, 8
    %v93 = vpop.permute.xlu0 %92
    %95 = vrot.lane.b32.xlu0 %v75, 52
    %v96 = vpop.permute.xlu0 %95
    %98 = vrot.lane.b32.xlu0 %v75, 96
    %v99 = vpop.permute.xlu0 %98
    %101 = vrot.lane.b32.xlu0 %v75, 12
    %v102 = vpop.permute.xlu0 %101
    %104 = vrot.lane.b32.xlu0 %v75, 56
    %v105 = vpop.permute.xlu0 %104
    %107 = vrot.lane.b32.xlu0 %v75, 100
    %v108 = vpop.permute.xlu0 %107
    %110 = vrot.lane.b32.xlu0 %v75, 16
    %v111 = vpop.permute.xlu0 %110
    %113 = vrot.lane.b32.xlu0 %v75, 60
    %v114 = vpop.permute.xlu0 %113
    %116 = vrot.lane.b32.xlu0 %v75, 104
    %v117 = vpop.permute.xlu0 %116
    %119 = vrot.lane.b32.xlu0 %v75, 20
    %v120 = vpop.permute.xlu0 %119
    %122 = vrot.lane.b32.xlu0 %v75, 64
    %v123 = vpop.permute.xlu0 %122
    %125 = vrot.lane.b32.xlu0 %v75, 108
    %v126 = vpop.permute.xlu0 %125
    %128 = vrot.lane.b32.xlu0 %v75, 24
    %v129 = vpop.permute.xlu0 %128
    %131 = vrot.lane.b32.xlu0 %v75, 68
    %v132 = vpop.permute.xlu0 %131
    %vm134 = vcmask 359424
    %v135 = vsel %vm134, %v75, %v78
    %vm136 = vcmask 719872
    %v137 = vsel %vm136, %v135, %v81
    %vm138 = vcmask 31744
    %v139 = vsel %vm138, %v81, %v84
    %vm140 = vcmask 392192
    %v141 = vsel %vm140, %v139, %v87
    %vm142 = vcmask 752640
    %v143 = vsel %vm142, %v141, %v90
    %vm144 = vcmask 64512
    %v145 = vsel %vm144, %v90, %v93
    %vm146 = vcmask 424960
    %v147 = vsel %vm146, %v145, %v96
    %vm148 = vcmask 785408
    %v149 = vsel %vm148, %v147, %v99
    %vm150 = vcmask 97280
    %v151 = vsel %vm150, %v99, %v102
    %vm152 = vcmask 457728
    %v153 = vsel %vm152, %v151, %v105
    %vm154 = vcmask 818176
    %v155 = vsel %vm154, %v153, %v108
    %vm156 = vcmask 130048
    %v157 = vsel %vm156, %v108, %v111
    %vm158 = vcmask 490496
    %v159 = vsel %vm158, %v157, %v114
    %vm160 = vcmask 850944
    %v161 = vsel %vm160, %v159, %v117
    %vm162 = vcmask 162816
    %v163 = vsel %vm162, %v117, %v120
    %vm164 = vcmask 523264
    %v165 = vsel %vm164, %v163, %v123
    %vm166 = vcmask 883712
    %v167 = vsel %vm166, %v165, %v126
    %vm168 = vcmask 195584
    %v169 = vsel %vm168, %v126, %v129
    %vm170 = vcmask 556032
    %v171 = vsel %vm170, %v169, %v132
    %v172 = vld [vmem:[%s1] sm:$0xff]
    %174 = vrot.lane.b32.xlu0 %v172, 44
    %v175 = vpop.permute.xlu0 %174
    %177 = vrot.lane.b32.xlu0 %v172, 88
    %v178 = vpop.permute.xlu0 %177
    %180 = vrot.lane.b32.xlu0 %v172, 4
    %v181 = vpop.permute.xlu0 %180
    %183 = vrot.lane.b32.xlu0 %v172, 48
    %v184 = vpop.permute.xlu0 %183
    %186 = vrot.lane.b32.xlu0 %v172, 92
    %v187 = vpop.permute.xlu0 %186
    %189 = vrot.lane.b32.xlu0 %v172, 8
    %v190 = vpop.permute.xlu0 %189
    %192 = vrot.lane.b32.xlu0 %v172, 52
    %v193 = vpop.permute.xlu0 %192
    %195 = vrot.lane.b32.xlu0 %v172, 96
    %v196 = vpop.permute.xlu0 %195
    %198 = vrot.lane.b32.xlu0 %v172, 12
    %v199 = vpop.permute.xlu0 %198
    %201 = vrot.lane.b32.xlu0 %v172, 56
    %v202 = vpop.permute.xlu0 %201
    %204 = vrot.lane.b32.xlu0 %v172, 100
    %v205 = vpop.permute.xlu0 %204
    %207 = vrot.lane.b32.xlu0 %v172, 16
    %v208 = vpop.permute.xlu0 %207
    %210 = vrot.lane.b32.xlu0 %v172, 60
    %v211 = vpop.permute.xlu0 %210
    %213 = vrot.lane.b32.xlu0 %v172, 104
    %v214 = vpop.permute.xlu0 %213
    %216 = vrot.lane.b32.xlu0 %v172, 20
    %v217 = vpop.permute.xlu0 %216
    %219 = vrot.lane.b32.xlu0 %v172, 64
    %v220 = vpop.permute.xlu0 %219
    %222 = vrot.lane.b32.xlu0 %v172, 108
    %v223 = vpop.permute.xlu0 %222
    %225 = vrot.lane.b32.xlu0 %v172, 24
    %v226 = vpop.permute.xlu0 %225
    %228 = vrot.lane.b32.xlu0 %v172, 68
    %v229 = vpop.permute.xlu0 %228
    %v231 = vsel %vm134, %v172, %v175
    %v232 = vsel %vm136, %v231, %v178
    %v233 = vsel %vm138, %v178, %v181
    %v234 = vsel %vm140, %v233, %v184
    %v235 = vsel %vm142, %v234, %v187
    %v236 = vsel %vm144, %v187, %v190
    %v237 = vsel %vm146, %v236, %v193
    %v238 = vsel %vm148, %v237, %v196
    %v239 = vsel %vm150, %v196, %v199
    %v240 = vsel %vm152, %v239, %v202
    %v241 = vsel %vm154, %v240, %v205
    %v242 = vsel %vm156, %v205, %v208
    %v243 = vsel %vm158, %v242, %v211
    %v244 = vsel %vm160, %v243, %v214
    %v245 = vsel %vm162, %v214, %v217
    %v246 = vsel %vm164, %v245, %v220
    %v247 = vsel %vm166, %v246, %v223
    %v248 = vsel %vm168, %v223, %v226
    %v249 = vsel %vm170, %v248, %v229
    %v250 = vld [vmem:[%s2] sm:$0x7f]
    %v252 = vlaneseq
    %v253 = vshrl.u32 %v252, 7
    %v254 = vsub.s32 0, %v253
    %v255 = vrot.slane %v250, %v254
    %v256 = vlaneseq
    %v257 = vshrl.u32 %v256, 7
    %v258 = vsub.s32 1, %v257
    %v259 = vrot.slane %v250, %v258
    %v260 = vlaneseq
    %v261 = vshrl.u32 %v260, 7
    %v262 = vsub.s32 2, %v261
    %v263 = vrot.slane %v250, %v262
    %v264 = vlaneseq
    %v265 = vshrl.u32 %v264, 7
    %v266 = vsub.s32 3, %v265
    %v267 = vrot.slane %v250, %v266
    %v268 = vlaneseq
    %v269 = vshrl.u32 %v268, 7
    %v270 = vsub.s32 4, %v269
    %v271 = vrot.slane %v250, %v270
    %v272 = vlaneseq
    %v273 = vshrl.u32 %v272, 7
    %v274 = vsub.s32 5, %v273
    %v275 = vrot.slane %v250, %v274
    %v276 = vlaneseq
    %v277 = vshrl.u32 %v276, 7
    %v278 = vsub.s32 6, %v277
    %v279 = vrot.slane %v250, %v278
    %v287 = vmul.f32 %v137, %v255
    %v288 = vmul.f32 %v143, %v259
    %v289 = vmul.f32 %v149, %v263
    %v290 = vmul.f32 %v155, %v267
    %v291 = vmul.f32 %v161, %v271
    %v292 = vmul.f32 %v167, %v275
    %v293 = vmul.f32 %v171, %v279
    %v294 = vld [vmem:[%s3] sm:$0x7f]
    %v296 = vlaneseq
    %v297 = vshrl.u32 %v296, 7
    %v298 = vsub.s32 0, %v297
    %v299 = vrot.slane %v294, %v298
    %v300 = vlaneseq
    %v301 = vshrl.u32 %v300, 7
    %v302 = vsub.s32 1, %v301
    %v303 = vrot.slane %v294, %v302
    %v304 = vlaneseq
    %v305 = vshrl.u32 %v304, 7
    %v306 = vsub.s32 2, %v305
    %v307 = vrot.slane %v294, %v306
    %v308 = vlaneseq
    %v309 = vshrl.u32 %v308, 7
    %v310 = vsub.s32 3, %v309
    %v311 = vrot.slane %v294, %v310
    %v312 = vlaneseq
    %v313 = vshrl.u32 %v312, 7
    %v314 = vsub.s32 4, %v313
    %v315 = vrot.slane %v294, %v314
    %v316 = vlaneseq
    %v317 = vshrl.u32 %v316, 7
    %v318 = vsub.s32 5, %v317
    %v319 = vrot.slane %v294, %v318
    %v320 = vlaneseq
    %v321 = vshrl.u32 %v320, 7
    %v322 = vsub.s32 6, %v321
    %v323 = vrot.slane %v294, %v322
    %v331 = vmul.f32 %v232, %v299
    %v332 = vmul.f32 %v235, %v303
    %v333 = vmul.f32 %v238, %v307
    %v334 = vmul.f32 %v241, %v311
    %v335 = vmul.f32 %v244, %v315
    %v336 = vmul.f32 %v247, %v319
    %v337 = vmul.f32 %v249, %v323
    %v338 = vadd.f32 %v287, %v331
    %v339 = vadd.f32 %v288, %v332
    %v340 = vadd.f32 %v289, %v333
    %v341 = vadd.f32 %v290, %v334
    %v342 = vadd.f32 %v291, %v335
    %v343 = vadd.f32 %v292, %v336
    %v344 = vadd.f32 %v293, %v337
    %v345 = vld [vmem:[%s4] sm:$0x7f]
    %v347 = vlaneseq
    %v348 = vshrl.u32 %v347, 7
    %v349 = vsub.s32 0, %v348
    %v350 = vrot.slane %v345, %v349
    %v351 = vlaneseq
    %v352 = vshrl.u32 %v351, 7
    %v353 = vsub.s32 1, %v352
    %v354 = vrot.slane %v345, %v353
    %v355 = vlaneseq
    %v356 = vshrl.u32 %v355, 7
    %v357 = vsub.s32 2, %v356
    %v358 = vrot.slane %v345, %v357
    %v359 = vlaneseq
    %v360 = vshrl.u32 %v359, 7
    %v361 = vsub.s32 3, %v360
    %v362 = vrot.slane %v345, %v361
    %v363 = vlaneseq
    %v364 = vshrl.u32 %v363, 7
    %v365 = vsub.s32 4, %v364
    %v366 = vrot.slane %v345, %v365
    %v367 = vlaneseq
    %v368 = vshrl.u32 %v367, 7
    %v369 = vsub.s32 5, %v368
    %v370 = vrot.slane %v345, %v369
    %v371 = vlaneseq
    %v372 = vshrl.u32 %v371, 7
    %v373 = vsub.s32 6, %v372
    %v374 = vrot.slane %v345, %v373
    %v382 = vadd.f32 %v338, %v350
    %v383 = vadd.f32 %v339, %v354
    %v384 = vadd.f32 %v340, %v358
    %v385 = vadd.f32 %v341, %v362
    %v386 = vadd.f32 %v342, %v366
    %v387 = vadd.f32 %v343, %v370
    %v388 = vadd.f32 %v344, %v374
    %v389 = vmax.f32 %v382, 0.0
    %v390 = vmax.f32 %v383, 0.0
    %v391 = vmax.f32 %v384, 0.0
    %v392 = vmax.f32 %v385, 0.0
    %v393 = vmax.f32 %v386, 0.0
    %v394 = vmax.f32 %v387, 0.0
    %v395 = vmax.f32 %v388, 0.0
    %v396 = vpack.c.bf16 %v389, %v389
    %v397 = vpack.c.bf16 %v390, %v390
    %v398 = vpack.c.bf16 %v391, %v391
    %v399 = vpack.c.bf16 %v392, %v392
    %v400 = vpack.c.bf16 %v393, %v393
    %v401 = vpack.c.bf16 %v394, %v394
    %v402 = vpack.c.bf16 %v395, %v395
    %v403 = vld [vmem:[#allocation3] sm:$0xff]
    %v404 = vld [vmem:[#allocation3 + $0x8] sm:$0xff]
    %v405 = vld [vmem:[#allocation3 + $0x10] sm:$0xff]
    %v406 = vld [vmem:[#allocation3 + $0x18] sm:$0xff]
    %v407 = vld [vmem:[#allocation3 + $0x20] sm:$0xff]
    %v408 = vld [vmem:[#allocation3 + $0x28] sm:$0xff]
    %v409 = vld [vmem:[#allocation3 + $0x30] sm:$0xff]
    %v410 = vld [vmem:[#allocation3 + $0x38] sm:$0xff]
    %v411 = vld [vmem:[#allocation3 + $0x40] sm:$0xff]
    %v412 = vld [vmem:[#allocation3 + $0x48] sm:$0xff]
    %v413 = vld [vmem:[#allocation3 + $0x50] sm:$0xff]
    %v414 = vld [vmem:[#allocation3 + $0x58] sm:$0xff]
    %v415 = vld [vmem:[#allocation3 + $0x60] sm:$0xff]
    %v416 = vld [vmem:[#allocation3 + $0x68] sm:$0xff]
    %v417 = vld [vmem:[#allocation3 + $0x70] sm:$0xff]
    %v418 = vld [vmem:[#allocation3 + $0x78] sm:$0xff]
    %v419 = vld [vmem:[#allocation3 + $0x80] sm:$0xff]
    %v420 = vld [vmem:[#allocation3 + $0x88] sm:$0xff]
    %v421 = vld [vmem:[#allocation3 + $0x90] sm:$0xff]
    %v422 = vld [vmem:[#allocation3 + $0x98] sm:$0xff]
    %v423 = vld [vmem:[#allocation3 + $0xa0] sm:$0xff]
    %v424 = vld [vmem:[#allocation3 + $0xa8] sm:$0xff]
    %v425 = vld [vmem:[#allocation3 + $0xb0] sm:$0xff]
    %v426 = vld [vmem:[#allocation3 + $0xb8] sm:$0xff]
    %v427 = vld [vmem:[#allocation3 + $0xc0] sm:$0xff]
    %v428 = vld [vmem:[#allocation3 + $0xc8] sm:$0xff]
    %v429 = vld [vmem:[#allocation3 + $0xd0] sm:$0xff]
    %v430 = vld [vmem:[#allocation3 + $0xd8] sm:$0xff]
    %v431 = vld [vmem:[#allocation3 + $0xe0] sm:$0xff]
    %v432 = vld [vmem:[#allocation3 + $0xe8] sm:$0xff]
    %v433 = vld [vmem:[#allocation3 + $0xf0] sm:$0xff]
    %v434 = vld [vmem:[#allocation3 + $0xf8] sm:$0xff]
    %v435 = vld [vmem:[#allocation3 + $0x100] sm:$0xff]
    %v436 = vld [vmem:[#allocation3 + $0x108] sm:$0xff]
    %v437 = vld [vmem:[#allocation3 + $0x110] sm:$0xff]
    %v438 = vld [vmem:[#allocation3 + $0x118] sm:$0xff]
    %v439 = vld [vmem:[#allocation3 + $0x120] sm:$0xff]
    %v440 = vld [vmem:[#allocation3 + $0x128] sm:$0xff]
    %v441 = vld [vmem:[#allocation3 + $0x130] sm:$0xff]
    %v442 = vld [vmem:[#allocation3 + $0x138] sm:$0xff]
    %v443 = vld [vmem:[#allocation3 + $0x140] sm:$0xff]
    %v444 = vld [vmem:[#allocation3 + $0x148] sm:$0xff]
    %v445 = vld [vmem:[#allocation3 + $0x150] sm:$0xff]
    %v446 = vld [vmem:[#allocation3 + $0x158] sm:$0xff]
    %v447 = vld [vmem:[#allocation3 + $0x160] sm:$0xff]
    %v448 = vld [vmem:[#allocation3 + $0x168] sm:$0xff]
    %v449 = vld [vmem:[#allocation3 + $0x170] sm:$0xff]
    %v450 = vld [vmem:[#allocation3 + $0x178] sm:$0xff]
    %v451 = vld [vmem:[#allocation3 + $0x180] sm:$0xff]
    %v452 = vld [vmem:[#allocation3 + $0x188] sm:$0xff]
    %v453 = vld [vmem:[#allocation3 + $0x190] sm:$0xff]
    %v454 = vld [vmem:[#allocation3 + $0x198] sm:$0xff]
    %v455 = vld [vmem:[#allocation3 + $0x1a0] sm:$0xff]
    %v456 = vld [vmem:[#allocation3 + $0x1a8] sm:$0xff]
    %v457 = vld [vmem:[#allocation3 + $0x1b0] sm:$0xff]
    %v458 = vld [vmem:[#allocation3 + $0x1b8] sm:$0xff]
    %v459 = vld [vmem:[#allocation3 + $0x1c0] sm:$0xff]
    %v460 = vld [vmem:[#allocation3 + $0x1c8] sm:$0xff]
    %v461 = vld [vmem:[#allocation3 + $0x1d0] sm:$0xff]
    %v462 = vld [vmem:[#allocation3 + $0x1d8] sm:$0xff]
    %v463 = vld [vmem:[#allocation3 + $0x1e0] sm:$0xff]
    %v464 = vld [vmem:[#allocation3 + $0x1e8] sm:$0xff]
    %v465 = vld [vmem:[#allocation3 + $0x1f0] sm:$0xff]
    %v466 = vld [vmem:[#allocation3 + $0x1f8] sm:$0xff]
    %v467 = vld [vmem:[#allocation3 + $0x200] sm:$0xff]
    %v468 = vld [vmem:[#allocation3 + $0x208] sm:$0xff]
    %v469 = vld [vmem:[#allocation3 + $0x210] sm:$0xff]
    %v470 = vld [vmem:[#allocation3 + $0x218] sm:$0xff]
    %v471 = vld [vmem:[#allocation3 + $0x220] sm:$0xff]
    %v472 = vld [vmem:[#allocation3 + $0x228] sm:$0xff]
    %v473 = vld [vmem:[#allocation3 + $0x230] sm:$0xff]
    %v474 = vld [vmem:[#allocation3 + $0x238] sm:$0xff]
    %v475 = vld [vmem:[#allocation3 + $0x240] sm:$0xff]
    %v476 = vld [vmem:[#allocation3 + $0x248] sm:$0xff]
    %v477 = vld [vmem:[#allocation3 + $0x250] sm:$0xff]
    %v478 = vld [vmem:[#allocation3 + $0x258] sm:$0xff]
    %v479 = vld [vmem:[#allocation3 + $0x260] sm:$0xff]
    %v480 = vld [vmem:[#allocation3 + $0x268] sm:$0xff]
    %v481 = vld [vmem:[#allocation3 + $0x270] sm:$0xff]
    %v482 = vld [vmem:[#allocation3 + $0x278] sm:$0xff]
    %v483 = vld [vmem:[#allocation3 + $0x280] sm:$0xff]
    %v484 = vld [vmem:[#allocation3 + $0x288] sm:$0xff]
    %v485 = vld [vmem:[#allocation3 + $0x290] sm:$0xff]
    %v486 = vld [vmem:[#allocation3 + $0x298] sm:$0xff]
    %v487 = vld [vmem:[#allocation3 + $0x2a0] sm:$0xff]
    %v488 = vld [vmem:[#allocation3 + $0x2a8] sm:$0xff]
    %v489 = vld [vmem:[#allocation3 + $0x2b0] sm:$0xff]
    %v490 = vld [vmem:[#allocation3 + $0x2b8] sm:$0xff]
    %v491 = vld [vmem:[#allocation3 + $0x2c0] sm:$0xff]
    %v492 = vld [vmem:[#allocation3 + $0x2c8] sm:$0xff]
    %v493 = vld [vmem:[#allocation3 + $0x2d0] sm:$0xff]
    %v494 = vld [vmem:[#allocation3 + $0x2d8] sm:$0xff]
    %v495 = vld [vmem:[#allocation3 + $0x2e0] sm:$0xff]
    %v496 = vld [vmem:[#allocation3 + $0x2e8] sm:$0xff]
    %v497 = vld [vmem:[#allocation3 + $0x2f0] sm:$0xff]
    %v498 = vld [vmem:[#allocation3 + $0x2f8] sm:$0xff]
    %v499 = vld [vmem:[#allocation3 + $0x300] sm:$0xff]
    %v500 = vld [vmem:[#allocation3 + $0x308] sm:$0xff]
    %v501 = vld [vmem:[#allocation3 + $0x310] sm:$0xff]
    %v502 = vld [vmem:[#allocation3 + $0x318] sm:$0xff]
    %v503 = vld [vmem:[#allocation3 + $0x320] sm:$0xff]
    %v504 = vld [vmem:[#allocation3 + $0x328] sm:$0xff]
    %v505 = vld [vmem:[#allocation3 + $0x330] sm:$0xff]
    %v506 = vld [vmem:[#allocation3 + $0x338] sm:$0xff]
    %v507 = vld [vmem:[#allocation3 + $0x340] sm:$0xff]
    %v508 = vld [vmem:[#allocation3 + $0x348] sm:$0xff]
    %v509 = vld [vmem:[#allocation3 + $0x350] sm:$0xff]
    %v510 = vld [vmem:[#allocation3 + $0x358] sm:$0xff]
    %v511 = vld [vmem:[#allocation3 + $0x360] sm:$0xff]
    %v512 = vld [vmem:[#allocation3 + $0x368] sm:$0xff]
    %v513 = vld [vmem:[#allocation3 + $0x370] sm:$0xff]
    %v514 = vld [vmem:[#allocation3 + $0x378] sm:$0xff]
    %v515 = vld [vmem:[#allocation3 + $0x380] sm:$0xff]
    %v516 = vld [vmem:[#allocation3 + $0x388] sm:$0xff]
    %v517 = vld [vmem:[#allocation3 + $0x390] sm:$0xff]
    %v518 = vld [vmem:[#allocation3 + $0x398] sm:$0xff]
    %v519 = vld [vmem:[#allocation3 + $0x3a0] sm:$0xff]
    %v520 = vld [vmem:[#allocation3 + $0x3a8] sm:$0xff]
    %v521 = vld [vmem:[#allocation3 + $0x3b0] sm:$0xff]
    %v522 = vld [vmem:[#allocation3 + $0x3b8] sm:$0xff]
    %v523 = vld [vmem:[#allocation3 + $0x3c0] sm:$0xff]
    %v524 = vld [vmem:[#allocation3 + $0x3c8] sm:$0xff]
    %v525 = vld [vmem:[#allocation3 + $0x3d0] sm:$0xff]
    %v526 = vld [vmem:[#allocation3 + $0x3d8] sm:$0xff]
    %v527 = vld [vmem:[#allocation3 + $0x3e0] sm:$0xff]
    %v528 = vld [vmem:[#allocation3 + $0x3e8] sm:$0xff]
    %v529 = vld [vmem:[#allocation3 + $0x3f0] sm:$0xff]
    %v530 = vld [vmem:[#allocation3 + $0x3f8] sm:$0xff]
    %v531 = vld [vmem:[#allocation3 + $0x400] sm:$0xff]
    %v532 = vld [vmem:[#allocation3 + $0x408] sm:$0xff]
    %v533 = vld [vmem:[#allocation3 + $0x410] sm:$0xff]
    %v534 = vld [vmem:[#allocation3 + $0x418] sm:$0xff]
    %v535 = vld [vmem:[#allocation3 + $0x420] sm:$0xff]
    %v536 = vld [vmem:[#allocation3 + $0x428] sm:$0xff]
    %v537 = vld [vmem:[#allocation3 + $0x430] sm:$0xff]
    %v538 = vld [vmem:[#allocation3 + $0x438] sm:$0xff]
    %v539 = vld [vmem:[#allocation3 + $0x440] sm:$0xff]
    %v540 = vld [vmem:[#allocation3 + $0x448] sm:$0xff]
    %v541 = vld [vmem:[#allocation3 + $0x450] sm:$0xff]
    %v542 = vld [vmem:[#allocation3 + $0x458] sm:$0xff]
    %v543 = vld [vmem:[#allocation3 + $0x460] sm:$0xff]
    %v544 = vld [vmem:[#allocation3 + $0x468] sm:$0xff]
    %v545 = vld [vmem:[#allocation3 + $0x470] sm:$0xff]
    %v546 = vld [vmem:[#allocation3 + $0x478] sm:$0xff]
    %v547 = vld [vmem:[#allocation3 + $0x480] sm:$0xff]
    %v548 = vld [vmem:[#allocation3 + $0x488] sm:$0xff]
    %v549 = vld [vmem:[#allocation3 + $0x490] sm:$0xff]
    %v550 = vld [vmem:[#allocation3 + $0x498] sm:$0xff]
    %v551 = vld [vmem:[#allocation3 + $0x4a0] sm:$0xff]
    %v552 = vld [vmem:[#allocation3 + $0x4a8] sm:$0xff]
    %v553 = vld [vmem:[#allocation3 + $0x4b0] sm:$0xff]
    %v554 = vld [vmem:[#allocation3 + $0x4b8] sm:$0xff]
    %v555 = vld [vmem:[#allocation3 + $0x4c0] sm:$0xff]
    %v556 = vld [vmem:[#allocation3 + $0x4c8] sm:$0xff]
    %v557 = vld [vmem:[#allocation3 + $0x4d0] sm:$0xff]
    %v558 = vld [vmem:[#allocation3 + $0x4d8] sm:$0xff]
    %v559 = vld [vmem:[#allocation3 + $0x4e0] sm:$0xff]
    %v560 = vld [vmem:[#allocation3 + $0x4e8] sm:$0xff]
    %v561 = vld [vmem:[#allocation3 + $0x4f0] sm:$0xff]
    %v562 = vld [vmem:[#allocation3 + $0x4f8] sm:$0xff]
    %v563 = vld [vmem:[#allocation3 + $0x500] sm:$0xff]
    %v564 = vld [vmem:[#allocation3 + $0x508] sm:$0xff]
    %v565 = vld [vmem:[#allocation3 + $0x510] sm:$0xff]
    %v566 = vld [vmem:[#allocation3 + $0x518] sm:$0xff]
    %v567 = vld [vmem:[#allocation3 + $0x520] sm:$0xff]
    %v568 = vld [vmem:[#allocation3 + $0x528] sm:$0xff]
    %v569 = vld [vmem:[#allocation3 + $0x530] sm:$0xff]
    %v570 = vld [vmem:[#allocation3 + $0x538] sm:$0xff]
    %v571 = vld [vmem:[#allocation3 + $0x540] sm:$0xff]
    %v572 = vld [vmem:[#allocation3 + $0x548] sm:$0xff]
    %v573 = vld [vmem:[#allocation3 + $0x550] sm:$0xff]
    %v574 = vld [vmem:[#allocation3 + $0x558] sm:$0xff]
    %v575 = vld [vmem:[#allocation3 + $0x560] sm:$0xff]
    %v576 = vld [vmem:[#allocation3 + $0x568] sm:$0xff]
    %v577 = vld [vmem:[#allocation3 + $0x570] sm:$0xff]
    %v578 = vld [vmem:[#allocation3 + $0x578] sm:$0xff]
    %v579 = vld [vmem:[#allocation3 + $0x580] sm:$0xff]
    %v580 = vld [vmem:[#allocation3 + $0x588] sm:$0xff]
    %v581 = vld [vmem:[#allocation3 + $0x590] sm:$0xff]
    %v582 = vld [vmem:[#allocation3 + $0x598] sm:$0xff]
    %v583 = vld [vmem:[#allocation3 + $0x5a0] sm:$0xff]
    %v584 = vld [vmem:[#allocation3 + $0x5a8] sm:$0xff]
    %v585 = vld [vmem:[#allocation3 + $0x5b0] sm:$0xff]
    %v586 = vld [vmem:[#allocation3 + $0x5b8] sm:$0xff]
    %v587 = vld [vmem:[#allocation3 + $0x5c0] sm:$0xff]
    %v588 = vld [vmem:[#allocation3 + $0x5c8] sm:$0xff]
    %v589 = vld [vmem:[#allocation3 + $0x5d0] sm:$0xff]
    %v590 = vld [vmem:[#allocation3 + $0x5d8] sm:$0xff]
    %v591 = vld [vmem:[#allocation3 + $0x5e0] sm:$0xff]
    %v592 = vld [vmem:[#allocation3 + $0x5e8] sm:$0xff]
    %v593 = vld [vmem:[#allocation3 + $0x5f0] sm:$0xff]
    %v594 = vld [vmem:[#allocation3 + $0x5f8] sm:$0xff]
    %v595 = vld [vmem:[#allocation3 + $0x600] sm:$0xff]
    %v596 = vld [vmem:[#allocation3 + $0x608] sm:$0xff]
    %v597 = vld [vmem:[#allocation3 + $0x610] sm:$0xff]
    %v598 = vld [vmem:[#allocation3 + $0x618] sm:$0xff]
    %v599 = vld [vmem:[#allocation3 + $0x620] sm:$0xff]
    %v600 = vld [vmem:[#allocation3 + $0x628] sm:$0xff]
    %v601 = vld [vmem:[#allocation3 + $0x630] sm:$0xff]
    %v602 = vld [vmem:[#allocation3 + $0x638] sm:$0xff]
    %v603 = vld [vmem:[#allocation3 + $0x640] sm:$0xff]
    %v604 = vld [vmem:[#allocation3 + $0x648] sm:$0xff]
    %v605 = vld [vmem:[#allocation3 + $0x650] sm:$0xff]
    %v606 = vld [vmem:[#allocation3 + $0x658] sm:$0xff]
    %v607 = vld [vmem:[#allocation3 + $0x660] sm:$0xff]
    %v608 = vld [vmem:[#allocation3 + $0x668] sm:$0xff]
    %v609 = vld [vmem:[#allocation3 + $0x670] sm:$0xff]
    %v610 = vld [vmem:[#allocation3 + $0x678] sm:$0xff]
    %v611 = vld [vmem:[#allocation3 + $0x680] sm:$0xff]
    %v612 = vld [vmem:[#allocation3 + $0x688] sm:$0xff]
    %v613 = vld [vmem:[#allocation3 + $0x690] sm:$0xff]
    %v614 = vld [vmem:[#allocation3 + $0x698] sm:$0xff]
    %v615 = vld [vmem:[#allocation3 + $0x6a0] sm:$0xff]
    %v616 = vld [vmem:[#allocation3 + $0x6a8] sm:$0xff]
    %v617 = vld [vmem:[#allocation3 + $0x6b0] sm:$0xff]
    %v618 = vld [vmem:[#allocation3 + $0x6b8] sm:$0xff]
    %v619 = vld [vmem:[#allocation3 + $0x6c0] sm:$0xff]
    %v620 = vld [vmem:[#allocation3 + $0x6c8] sm:$0xff]
    %v621 = vld [vmem:[#allocation3 + $0x6d0] sm:$0xff]
    %v622 = vld [vmem:[#allocation3 + $0x6d8] sm:$0xff]
    %v623 = vld [vmem:[%s6] sm:$0xf]
    %v625 = vlaneseq
    %v626 = vshrl.u32 %v625, 7
    %v627 = vsub.s32 0, %v626
    %v628 = vrot.slane %v623, %v627
    %v629 = vlaneseq
    %v630 = vshrl.u32 %v629, 7
    %v631 = vsub.s32 1, %v630
    %v632 = vrot.slane %v623, %v631
    %v633 = vlaneseq
    %v634 = vshrl.u32 %v633, 7
    %v635 = vsub.s32 2, %v634
    %v636 = vrot.slane %v623, %v635
    %v637 = vlaneseq
    %v638 = vshrl.u32 %v637, 7
    %v639 = vsub.s32 3, %v638
    %v640 = vrot.slane %v623, %v639
    %v865 = vunpack.c.l.b16 %v403
    %v866 = vunpack.c.h.b16 %v403
    %v867 = vunpack.c.l.b16 %v404
    %v868 = vunpack.c.h.b16 %v404
    %v869 = vunpack.c.l.b16 %v405
    %v870 = vunpack.c.h.b16 %v405
    %v871 = vunpack.c.l.b16 %v406
    %v872 = vunpack.c.h.b16 %v406
    %v873 = vunpack.c.l.b16 %v407
    %v874 = vunpack.c.h.b16 %v407
    %v875 = vunpack.c.l.b16 %v408
    %v876 = vunpack.c.h.b16 %v408
    %v877 = vunpack.c.l.b16 %v409
    %v878 = vunpack.c.h.b16 %v409
    %v879 = vunpack.c.l.b16 %v410
    %v880 = vunpack.c.h.b16 %v410
    %v881 = vunpack.c.l.b16 %v411
    %v882 = vunpack.c.h.b16 %v411
    %v883 = vunpack.c.l.b16 %v412
    %v884 = vunpack.c.h.b16 %v412
    %v885 = vunpack.c.l.b16 %v413
    %v886 = vunpack.c.h.b16 %v413
    %v887 = vunpack.c.l.b16 %v414
    %v888 = vunpack.c.h.b16 %v414
    %v889 = vunpack.c.l.b16 %v415
    %v890 = vunpack.c.h.b16 %v415
    %v891 = vunpack.c.l.b16 %v416
    %v892 = vunpack.c.h.b16 %v416
    %v893 = vunpack.c.l.b16 %v417
    %v894 = vunpack.c.h.b16 %v417
    %v895 = vunpack.c.l.b16 %v418
    %v896 = vunpack.c.h.b16 %v418
    %v897 = vunpack.c.l.b16 %v419
    %v898 = vunpack.c.h.b16 %v419
    %v899 = vunpack.c.l.b16 %v420
    %v900 = vunpack.c.h.b16 %v420
    %v901 = vunpack.c.l.b16 %v421
    %v902 = vunpack.c.h.b16 %v421
    %v903 = vunpack.c.l.b16 %v422
    %v904 = vunpack.c.h.b16 %v422
    %v905 = vunpack.c.l.b16 %v423
    %v906 = vunpack.c.h.b16 %v423
    %v907 = vunpack.c.l.b16 %v424
    %v908 = vunpack.c.h.b16 %v424
    %v909 = vunpack.c.l.b16 %v425
    %v910 = vunpack.c.h.b16 %v425
    %v911 = vunpack.c.l.b16 %v426
    %v912 = vunpack.c.h.b16 %v426
    %v913 = vunpack.c.l.b16 %v427
    %v914 = vunpack.c.h.b16 %v427
    %v915 = vunpack.c.l.b16 %v428
    %v916 = vunpack.c.h.b16 %v428
    %v917 = vunpack.c.l.b16 %v429
    %v918 = vunpack.c.h.b16 %v429
    %v919 = vunpack.c.l.b16 %v430
    %v920 = vunpack.c.h.b16 %v430
    %v921 = vunpack.c.l.b16 %v431
    %v922 = vunpack.c.h.b16 %v431
    %v923 = vunpack.c.l.b16 %v432
    %v924 = vunpack.c.h.b16 %v432
    %v925 = vunpack.c.l.b16 %v433
    %v926 = vunpack.c.h.b16 %v433
    %v927 = vunpack.c.l.b16 %v434
    %v928 = vunpack.c.h.b16 %v434
    %v929 = vunpack.c.l.b16 %v435
    %v930 = vunpack.c.h.b16 %v435
    %v931 = vunpack.c.l.b16 %v436
    %v932 = vunpack.c.h.b16 %v436
    %v933 = vunpack.c.l.b16 %v437
    %v934 = vunpack.c.h.b16 %v437
    %v935 = vunpack.c.l.b16 %v438
    %v936 = vunpack.c.h.b16 %v438
    %v937 = vunpack.c.l.b16 %v439
    %v938 = vunpack.c.h.b16 %v439
    %v939 = vunpack.c.l.b16 %v440
    %v940 = vunpack.c.h.b16 %v440
    %v941 = vunpack.c.l.b16 %v441
    %v942 = vunpack.c.h.b16 %v441
    %v943 = vunpack.c.l.b16 %v442
    %v944 = vunpack.c.h.b16 %v442
    %v945 = vunpack.c.l.b16 %v443
    %v946 = vunpack.c.h.b16 %v443
    %v947 = vunpack.c.l.b16 %v444
    %v948 = vunpack.c.h.b16 %v444
    %v949 = vunpack.c.l.b16 %v445
    %v950 = vunpack.c.h.b16 %v445
    %v951 = vunpack.c.l.b16 %v446
    %v952 = vunpack.c.h.b16 %v446
    %v953 = vunpack.c.l.b16 %v447
    %v954 = vunpack.c.h.b16 %v447
    %v955 = vunpack.c.l.b16 %v448
    %v956 = vunpack.c.h.b16 %v448
    %v957 = vunpack.c.l.b16 %v449
    %v958 = vunpack.c.h.b16 %v449
    %v959 = vunpack.c.l.b16 %v450
    %v960 = vunpack.c.h.b16 %v450
    %v961 = vunpack.c.l.b16 %v451
    %v962 = vunpack.c.h.b16 %v451
    %v963 = vunpack.c.l.b16 %v452
    %v964 = vunpack.c.h.b16 %v452
    %v965 = vunpack.c.l.b16 %v453
    %v966 = vunpack.c.h.b16 %v453
    %v967 = vunpack.c.l.b16 %v454
    %v968 = vunpack.c.h.b16 %v454
    %v969 = vunpack.c.l.b16 %v455
    %v970 = vunpack.c.h.b16 %v455
    %v971 = vunpack.c.l.b16 %v456
    %v972 = vunpack.c.h.b16 %v456
    %v973 = vunpack.c.l.b16 %v457
    %v974 = vunpack.c.h.b16 %v457
    %v975 = vunpack.c.l.b16 %v458
    %v976 = vunpack.c.h.b16 %v458
    %v977 = vunpack.c.l.b16 %v459
    %v978 = vunpack.c.h.b16 %v459
    %v979 = vunpack.c.l.b16 %v460
    %v980 = vunpack.c.h.b16 %v460
    %v981 = vunpack.c.l.b16 %v461
    %v982 = vunpack.c.h.b16 %v461
    %v983 = vunpack.c.l.b16 %v462
    %v984 = vunpack.c.h.b16 %v462
    %v985 = vunpack.c.l.b16 %v463
    %v986 = vunpack.c.h.b16 %v463
    %v987 = vunpack.c.l.b16 %v464
    %v988 = vunpack.c.h.b16 %v464
    %v989 = vunpack.c.l.b16 %v465
    %v990 = vunpack.c.h.b16 %v465
    %v991 = vunpack.c.l.b16 %v466
    %v992 = vunpack.c.h.b16 %v466
    %v993 = vunpack.c.l.b16 %v467
    %v994 = vunpack.c.h.b16 %v467
    %v995 = vunpack.c.l.b16 %v468
    %v996 = vunpack.c.h.b16 %v468
    %v997 = vunpack.c.l.b16 %v469
    %v998 = vunpack.c.h.b16 %v469
    %v999 = vunpack.c.l.b16 %v470
    %v1000 = vunpack.c.h.b16 %v470
    %v1001 = vunpack.c.l.b16 %v471
    %v1002 = vunpack.c.h.b16 %v471
    %v1003 = vunpack.c.l.b16 %v472
    %v1004 = vunpack.c.h.b16 %v472
    %v1005 = vunpack.c.l.b16 %v473
    %v1006 = vunpack.c.h.b16 %v473
    %v1007 = vunpack.c.l.b16 %v474
    %v1008 = vunpack.c.h.b16 %v474
    %v1009 = vunpack.c.l.b16 %v475
    %v1010 = vunpack.c.h.b16 %v475
    %v1011 = vunpack.c.l.b16 %v476
    %v1012 = vunpack.c.h.b16 %v476
    %v1013 = vunpack.c.l.b16 %v477
    %v1014 = vunpack.c.h.b16 %v477
    %v1015 = vunpack.c.l.b16 %v478
    %v1016 = vunpack.c.h.b16 %v478
    %v1017 = vunpack.c.l.b16 %v479
    %v1018 = vunpack.c.h.b16 %v479
    %v1019 = vunpack.c.l.b16 %v480
    %v1020 = vunpack.c.h.b16 %v480
    %v1021 = vunpack.c.l.b16 %v481
    %v1022 = vunpack.c.h.b16 %v481
    %v1023 = vunpack.c.l.b16 %v482
    %v1024 = vunpack.c.h.b16 %v482
    %v1025 = vunpack.c.l.b16 %v483
    %v1026 = vunpack.c.h.b16 %v483
    %v1027 = vunpack.c.l.b16 %v484
    %v1028 = vunpack.c.h.b16 %v484
    %v1029 = vunpack.c.l.b16 %v485
    %v1030 = vunpack.c.h.b16 %v485
    %v1031 = vunpack.c.l.b16 %v486
    %v1032 = vunpack.c.h.b16 %v486
    %v1033 = vunpack.c.l.b16 %v487
    %v1034 = vunpack.c.h.b16 %v487
    %v1035 = vunpack.c.l.b16 %v488
    %v1036 = vunpack.c.h.b16 %v488
    %v1037 = vunpack.c.l.b16 %v489
    %v1038 = vunpack.c.h.b16 %v489
    %v1039 = vunpack.c.l.b16 %v490
    %v1040 = vunpack.c.h.b16 %v490
    %v1041 = vunpack.c.l.b16 %v491
    %v1042 = vunpack.c.h.b16 %v491
    %v1043 = vunpack.c.l.b16 %v492
    %v1044 = vunpack.c.h.b16 %v492
    %v1045 = vunpack.c.l.b16 %v493
    %v1046 = vunpack.c.h.b16 %v493
    %v1047 = vunpack.c.l.b16 %v494
    %v1048 = vunpack.c.h.b16 %v494
    %v1049 = vunpack.c.l.b16 %v495
    %v1050 = vunpack.c.h.b16 %v495
    %v1051 = vunpack.c.l.b16 %v496
    %v1052 = vunpack.c.h.b16 %v496
    %v1053 = vunpack.c.l.b16 %v497
    %v1054 = vunpack.c.h.b16 %v497
    %v1055 = vunpack.c.l.b16 %v498
    %v1056 = vunpack.c.h.b16 %v498
    %v1057 = vunpack.c.l.b16 %v499
    %v1058 = vunpack.c.h.b16 %v499
    %v1059 = vunpack.c.l.b16 %v500
    %v1060 = vunpack.c.h.b16 %v500
    %v1061 = vunpack.c.l.b16 %v501
    %v1062 = vunpack.c.h.b16 %v501
    %v1063 = vunpack.c.l.b16 %v502
    %v1064 = vunpack.c.h.b16 %v502
    %v1065 = vunpack.c.l.b16 %v503
    %v1066 = vunpack.c.h.b16 %v503
    %v1067 = vunpack.c.l.b16 %v504
    %v1068 = vunpack.c.h.b16 %v504
    %v1069 = vunpack.c.l.b16 %v505
    %v1070 = vunpack.c.h.b16 %v505
    %v1071 = vunpack.c.l.b16 %v506
    %v1072 = vunpack.c.h.b16 %v506
    %v1073 = vunpack.c.l.b16 %v507
    %v1074 = vunpack.c.h.b16 %v507
    %v1075 = vunpack.c.l.b16 %v508
    %v1076 = vunpack.c.h.b16 %v508
    %v1077 = vunpack.c.l.b16 %v509
    %v1078 = vunpack.c.h.b16 %v509
    %v1079 = vunpack.c.l.b16 %v510
    %v1080 = vunpack.c.h.b16 %v510
    %v1081 = vunpack.c.l.b16 %v511
    %v1082 = vunpack.c.h.b16 %v511
    %v1083 = vunpack.c.l.b16 %v512
    %v1084 = vunpack.c.h.b16 %v512
    %v1085 = vunpack.c.l.b16 %v513
    %v1086 = vunpack.c.h.b16 %v513
    %v1087 = vunpack.c.l.b16 %v514
    %v1088 = vunpack.c.h.b16 %v514
    %v1089 = vunpack.c.l.b16 %v515
    %v1090 = vunpack.c.h.b16 %v515
    %v1091 = vunpack.c.l.b16 %v516
    %v1092 = vunpack.c.h.b16 %v516
    %v1093 = vunpack.c.l.b16 %v517
    %v1094 = vunpack.c.h.b16 %v517
    %v1095 = vunpack.c.l.b16 %v518
    %v1096 = vunpack.c.h.b16 %v518
    %v1097 = vunpack.c.l.b16 %v519
    %v1098 = vunpack.c.h.b16 %v519
    %v1099 = vunpack.c.l.b16 %v520
    %v1100 = vunpack.c.h.b16 %v520
    %v1101 = vunpack.c.l.b16 %v521
    %v1102 = vunpack.c.h.b16 %v521
    %v1103 = vunpack.c.l.b16 %v522
    %v1104 = vunpack.c.h.b16 %v522
    %v1105 = vunpack.c.l.b16 %v523
    %v1106 = vunpack.c.h.b16 %v523
    %v1107 = vunpack.c.l.b16 %v524
    %v1108 = vunpack.c.h.b16 %v524
    %v1109 = vunpack.c.l.b16 %v525
    %v1110 = vunpack.c.h.b16 %v525
    %v1111 = vunpack.c.l.b16 %v526
    %v1112 = vunpack.c.h.b16 %v526
    %v1113 = vunpack.c.l.b16 %v527
    %v1114 = vunpack.c.h.b16 %v527
    %v1115 = vunpack.c.l.b16 %v528
    %v1116 = vunpack.c.h.b16 %v528
    %v1117 = vunpack.c.l.b16 %v529
    %v1118 = vunpack.c.h.b16 %v529
    %v1119 = vunpack.c.l.b16 %v530
    %v1120 = vunpack.c.h.b16 %v530
    %v1121 = vunpack.c.l.b16 %v531
    %v1122 = vunpack.c.h.b16 %v531
    %v1123 = vunpack.c.l.b16 %v532
    %v1124 = vunpack.c.h.b16 %v532
    %v1125 = vunpack.c.l.b16 %v533
    %v1126 = vunpack.c.h.b16 %v533
    %v1127 = vunpack.c.l.b16 %v534
    %v1128 = vunpack.c.h.b16 %v534
    %v1129 = vunpack.c.l.b16 %v535
    %v1130 = vunpack.c.h.b16 %v535
    %v1131 = vunpack.c.l.b16 %v536
    %v1132 = vunpack.c.h.b16 %v536
    %v1133 = vunpack.c.l.b16 %v537
    %v1134 = vunpack.c.h.b16 %v537
    %v1135 = vunpack.c.l.b16 %v538
    %v1136 = vunpack.c.h.b16 %v538
    %v1137 = vunpack.c.l.b16 %v539
    %v1138 = vunpack.c.h.b16 %v539
    %v1139 = vunpack.c.l.b16 %v540
    %v1140 = vunpack.c.h.b16 %v540
    %v1141 = vunpack.c.l.b16 %v541
    %v1142 = vunpack.c.h.b16 %v541
    %v1143 = vunpack.c.l.b16 %v542
    %v1144 = vunpack.c.h.b16 %v542
    %v1145 = vunpack.c.l.b16 %v543
    %v1146 = vunpack.c.h.b16 %v543
    %v1147 = vunpack.c.l.b16 %v544
    %v1148 = vunpack.c.h.b16 %v544
    %v1149 = vunpack.c.l.b16 %v545
    %v1150 = vunpack.c.h.b16 %v545
    %v1151 = vunpack.c.l.b16 %v546
    %v1152 = vunpack.c.h.b16 %v546
    %v1153 = vunpack.c.l.b16 %v547
    %v1154 = vunpack.c.h.b16 %v547
    %v1155 = vunpack.c.l.b16 %v548
    %v1156 = vunpack.c.h.b16 %v548
    %v1157 = vunpack.c.l.b16 %v549
    %v1158 = vunpack.c.h.b16 %v549
    %v1159 = vunpack.c.l.b16 %v550
    %v1160 = vunpack.c.h.b16 %v550
    %v1161 = vunpack.c.l.b16 %v551
    %v1162 = vunpack.c.h.b16 %v551
    %v1163 = vunpack.c.l.b16 %v552
    %v1164 = vunpack.c.h.b16 %v552
    %v1165 = vunpack.c.l.b16 %v553
    %v1166 = vunpack.c.h.b16 %v553
    %v1167 = vunpack.c.l.b16 %v554
    %v1168 = vunpack.c.h.b16 %v554
    %v1169 = vunpack.c.l.b16 %v555
    %v1170 = vunpack.c.h.b16 %v555
    %v1171 = vunpack.c.l.b16 %v556
    %v1172 = vunpack.c.h.b16 %v556
    %v1173 = vunpack.c.l.b16 %v557
    %v1174 = vunpack.c.h.b16 %v557
    %v1175 = vunpack.c.l.b16 %v558
    %v1176 = vunpack.c.h.b16 %v558
    %v1177 = vunpack.c.l.b16 %v559
    %v1178 = vunpack.c.h.b16 %v559
    %v1179 = vunpack.c.l.b16 %v560
    %v1180 = vunpack.c.h.b16 %v560
    %v1181 = vunpack.c.l.b16 %v561
    %v1182 = vunpack.c.h.b16 %v561
    %v1183 = vunpack.c.l.b16 %v562
    %v1184 = vunpack.c.h.b16 %v562
    %v1185 = vunpack.c.l.b16 %v563
    %v1186 = vunpack.c.h.b16 %v563
    %v1187 = vunpack.c.l.b16 %v564
    %v1188 = vunpack.c.h.b16 %v564
    %v1189 = vunpack.c.l.b16 %v565
    %v1190 = vunpack.c.h.b16 %v565
    %v1191 = vunpack.c.l.b16 %v566
    %v1192 = vunpack.c.h.b16 %v566
    %v1193 = vunpack.c.l.b16 %v567
    %v1194 = vunpack.c.h.b16 %v567
    %v1195 = vunpack.c.l.b16 %v568
    %v1196 = vunpack.c.h.b16 %v568
    %v1197 = vunpack.c.l.b16 %v569
    %v1198 = vunpack.c.h.b16 %v569
    %v1199 = vunpack.c.l.b16 %v570
    %v1200 = vunpack.c.h.b16 %v570
    %v1201 = vunpack.c.l.b16 %v571
    %v1202 = vunpack.c.h.b16 %v571
    %v1203 = vunpack.c.l.b16 %v572
    %v1204 = vunpack.c.h.b16 %v572
    %v1205 = vunpack.c.l.b16 %v573
    %v1206 = vunpack.c.h.b16 %v573
    %v1207 = vunpack.c.l.b16 %v574
    %v1208 = vunpack.c.h.b16 %v574
    %v1209 = vunpack.c.l.b16 %v575
    %v1210 = vunpack.c.h.b16 %v575
    %v1211 = vunpack.c.l.b16 %v576
    %v1212 = vunpack.c.h.b16 %v576
    %v1213 = vunpack.c.l.b16 %v577
    %v1214 = vunpack.c.h.b16 %v577
    %v1215 = vunpack.c.l.b16 %v578
    %v1216 = vunpack.c.h.b16 %v578
    %v1217 = vunpack.c.l.b16 %v579
    %v1218 = vunpack.c.h.b16 %v579
    %v1219 = vunpack.c.l.b16 %v580
    %v1220 = vunpack.c.h.b16 %v580
    %v1221 = vunpack.c.l.b16 %v581
    %v1222 = vunpack.c.h.b16 %v581
    %v1223 = vunpack.c.l.b16 %v582
    %v1224 = vunpack.c.h.b16 %v582
    %v1225 = vunpack.c.l.b16 %v583
    %v1226 = vunpack.c.h.b16 %v583
    %v1227 = vunpack.c.l.b16 %v584
    %v1228 = vunpack.c.h.b16 %v584
    %v1229 = vunpack.c.l.b16 %v585
    %v1230 = vunpack.c.h.b16 %v585
    %v1231 = vunpack.c.l.b16 %v586
    %v1232 = vunpack.c.h.b16 %v586
    %v1233 = vunpack.c.l.b16 %v587
    %v1234 = vunpack.c.h.b16 %v587
    %v1235 = vunpack.c.l.b16 %v588
    %v1236 = vunpack.c.h.b16 %v588
    %v1237 = vunpack.c.l.b16 %v589
    %v1238 = vunpack.c.h.b16 %v589
    %v1239 = vunpack.c.l.b16 %v590
    %v1240 = vunpack.c.h.b16 %v590
    %v1241 = vunpack.c.l.b16 %v591
    %v1242 = vunpack.c.h.b16 %v591
    %v1243 = vunpack.c.l.b16 %v592
    %v1244 = vunpack.c.h.b16 %v592
    %v1245 = vunpack.c.l.b16 %v593
    %v1246 = vunpack.c.h.b16 %v593
    %v1247 = vunpack.c.l.b16 %v594
    %v1248 = vunpack.c.h.b16 %v594
    %v1249 = vunpack.c.l.b16 %v595
    %v1250 = vunpack.c.h.b16 %v595
    %v1251 = vunpack.c.l.b16 %v596
    %v1252 = vunpack.c.h.b16 %v596
    %v1253 = vunpack.c.l.b16 %v597
    %v1254 = vunpack.c.h.b16 %v597
    %v1255 = vunpack.c.l.b16 %v598
    %v1256 = vunpack.c.h.b16 %v598
    %v1257 = vunpack.c.l.b16 %v599
    %v1258 = vunpack.c.h.b16 %v599
    %v1259 = vunpack.c.l.b16 %v600
    %v1260 = vunpack.c.h.b16 %v600
    %v1261 = vunpack.c.l.b16 %v601
    %v1262 = vunpack.c.h.b16 %v601
    %v1263 = vunpack.c.l.b16 %v602
    %v1264 = vunpack.c.h.b16 %v602
    %v1265 = vunpack.c.l.b16 %v603
    %v1266 = vunpack.c.h.b16 %v603
    %v1267 = vunpack.c.l.b16 %v604
    %v1268 = vunpack.c.h.b16 %v604
    %v1269 = vunpack.c.l.b16 %v605
    %v1270 = vunpack.c.h.b16 %v605
    %v1271 = vunpack.c.l.b16 %v606
    %v1272 = vunpack.c.h.b16 %v606
    %v1273 = vunpack.c.l.b16 %v607
    %v1274 = vunpack.c.h.b16 %v607
    %v1275 = vunpack.c.l.b16 %v608
    %v1276 = vunpack.c.h.b16 %v608
    %v1277 = vunpack.c.l.b16 %v609
    %v1278 = vunpack.c.h.b16 %v609
    %v1279 = vunpack.c.l.b16 %v610
    %v1280 = vunpack.c.h.b16 %v610
    %v1281 = vunpack.c.l.b16 %v611
    %v1282 = vunpack.c.h.b16 %v611
    %v1283 = vunpack.c.l.b16 %v612
    %v1284 = vunpack.c.h.b16 %v612
    %v1285 = vunpack.c.l.b16 %v613
    %v1286 = vunpack.c.h.b16 %v613
    %v1287 = vunpack.c.l.b16 %v614
    %v1288 = vunpack.c.h.b16 %v614
    %v1289 = vunpack.c.l.b16 %v615
    %v1290 = vunpack.c.h.b16 %v615
    %v1291 = vunpack.c.l.b16 %v616
    %v1292 = vunpack.c.h.b16 %v616
    %v1293 = vunpack.c.l.b16 %v617
    %v1294 = vunpack.c.h.b16 %v617
    %v1295 = vunpack.c.l.b16 %v618
    %v1296 = vunpack.c.h.b16 %v618
    %v1297 = vunpack.c.l.b16 %v619
    %v1298 = vunpack.c.h.b16 %v619
    %v1299 = vunpack.c.l.b16 %v620
    %v1300 = vunpack.c.h.b16 %v620
    %v1301 = vunpack.c.l.b16 %v621
    %v1302 = vunpack.c.h.b16 %v621
    %v1303 = vunpack.c.l.b16 %v622
    %v1304 = vunpack.c.h.b16 %v622
    %v1305 = vpack.c.b16 %v869, %v865
    %v1306 = vpack.c.b16 %v870, %v866
    %v1307 = vpack.c.b16 %v871, %v867
    %v1308 = vpack.c.b16 %v872, %v868
    %v1309 = vpack.c.b16 %v877, %v873
    %v1310 = vpack.c.b16 %v878, %v874
    %v1311 = vpack.c.b16 %v879, %v875
    %v1312 = vpack.c.b16 %v880, %v876
    %v1313 = vpack.c.b16 %v885, %v881
    %v1314 = vpack.c.b16 %v886, %v882
    %v1315 = vpack.c.b16 %v887, %v883
    %v1316 = vpack.c.b16 %v888, %v884
    %v1317 = vpack.c.b16 %v893, %v889
    %v1318 = vpack.c.b16 %v894, %v890
    %v1319 = vpack.c.b16 %v895, %v891
    %v1320 = vpack.c.b16 %v896, %v892
    %v1321 = vpack.c.b16 %v901, %v897
    %v1322 = vpack.c.b16 %v902, %v898
    %v1323 = vpack.c.b16 %v903, %v899
    %v1324 = vpack.c.b16 %v904, %v900
    %v1325 = vpack.c.b16 %v909, %v905
    %v1326 = vpack.c.b16 %v910, %v906
    %v1327 = vpack.c.b16 %v911, %v907
    %v1328 = vpack.c.b16 %v912, %v908
    %v1329 = vpack.c.b16 %v917, %v913
    %v1330 = vpack.c.b16 %v918, %v914
    %v1331 = vpack.c.b16 %v919, %v915
    %v1332 = vpack.c.b16 %v920, %v916
    %v1333 = vpack.c.b16 %v925, %v921
    %v1334 = vpack.c.b16 %v926, %v922
    %v1335 = vpack.c.b16 %v927, %v923
    %v1336 = vpack.c.b16 %v928, %v924
    %v1337 = vpack.c.b16 %v933, %v929
    %v1338 = vpack.c.b16 %v934, %v930
    %v1339 = vpack.c.b16 %v935, %v931
    %v1340 = vpack.c.b16 %v936, %v932
    %v1341 = vpack.c.b16 %v941, %v937
    %v1342 = vpack.c.b16 %v942, %v938
    %v1343 = vpack.c.b16 %v943, %v939
    %v1344 = vpack.c.b16 %v944, %v940
    %v1345 = vpack.c.b16 %v949, %v945
    %v1346 = vpack.c.b16 %v950, %v946
    %v1347 = vpack.c.b16 %v951, %v947
    %v1348 = vpack.c.b16 %v952, %v948
    %v1349 = vpack.c.b16 %v957, %v953
    %v1350 = vpack.c.b16 %v958, %v954
    %v1351 = vpack.c.b16 %v959, %v955
    %v1352 = vpack.c.b16 %v960, %v956
    %v1353 = vpack.c.b16 %v965, %v961
    %v1354 = vpack.c.b16 %v966, %v962
    %v1355 = vpack.c.b16 %v967, %v963
    %v1356 = vpack.c.b16 %v968, %v964
    %v1357 = vpack.c.b16 %v973, %v969
    %v1358 = vpack.c.b16 %v974, %v970
    %v1359 = vpack.c.b16 %v975, %v971
    %v1360 = vpack.c.b16 %v976, %v972
    %v1361 = vpack.c.b16 %v981, %v977
    %v1362 = vpack.c.b16 %v982, %v978
    %v1363 = vpack.c.b16 %v983, %v979
    %v1364 = vpack.c.b16 %v984, %v980
    %v1365 = vpack.c.b16 %v989, %v985
    %v1366 = vpack.c.b16 %v990, %v986
    %v1367 = vpack.c.b16 %v991, %v987
    %v1368 = vpack.c.b16 %v992, %v988
    %v1369 = vpack.c.b16 %v997, %v993
    %v1370 = vpack.c.b16 %v998, %v994
    %v1371 = vpack.c.b16 %v999, %v995
    %v1372 = vpack.c.b16 %v1000, %v996
    %v1373 = vpack.c.b16 %v1005, %v1001
    %v1374 = vpack.c.b16 %v1006, %v1002
    %v1375 = vpack.c.b16 %v1007, %v1003
    %v1376 = vpack.c.b16 %v1008, %v1004
    %v1377 = vpack.c.b16 %v1013, %v1009
    %v1378 = vpack.c.b16 %v1014, %v1010
    %v1379 = vpack.c.b16 %v1015, %v1011
    %v1380 = vpack.c.b16 %v1016, %v1012
    %v1381 = vpack.c.b16 %v1021, %v1017
    %v1382 = vpack.c.b16 %v1022, %v1018
    %v1383 = vpack.c.b16 %v1023, %v1019
    %v1384 = vpack.c.b16 %v1024, %v1020
    %v1385 = vpack.c.b16 %v1029, %v1025
    %v1386 = vpack.c.b16 %v1030, %v1026
    %v1387 = vpack.c.b16 %v1031, %v1027
    %v1388 = vpack.c.b16 %v1032, %v1028
    %v1389 = vpack.c.b16 %v1037, %v1033
    %v1390 = vpack.c.b16 %v1038, %v1034
    %v1391 = vpack.c.b16 %v1039, %v1035
    %v1392 = vpack.c.b16 %v1040, %v1036
    %v1393 = vpack.c.b16 %v1045, %v1041
    %v1394 = vpack.c.b16 %v1046, %v1042
    %v1395 = vpack.c.b16 %v1047, %v1043
    %v1396 = vpack.c.b16 %v1048, %v1044
    %v1397 = vpack.c.b16 %v1053, %v1049
    %v1398 = vpack.c.b16 %v1054, %v1050
    %v1399 = vpack.c.b16 %v1055, %v1051
    %v1400 = vpack.c.b16 %v1056, %v1052
    %v1401 = vpack.c.b16 %v1061, %v1057
    %v1402 = vpack.c.b16 %v1062, %v1058
    %v1403 = vpack.c.b16 %v1063, %v1059
    %v1404 = vpack.c.b16 %v1064, %v1060
    %v1405 = vpack.c.b16 %v1069, %v1065
    %v1406 = vpack.c.b16 %v1070, %v1066
    %v1407 = vpack.c.b16 %v1071, %v1067
    %v1408 = vpack.c.b16 %v1072, %v1068
    %v1409 = vpack.c.b16 %v1077, %v1073
    %v1410 = vpack.c.b16 %v1078, %v1074
    %v1411 = vpack.c.b16 %v1079, %v1075
    %v1412 = vpack.c.b16 %v1080, %v1076
    %v1413 = vpack.c.b16 %v1085, %v1081
    %v1414 = vpack.c.b16 %v1086, %v1082
    %v1415 = vpack.c.b16 %v1087, %v1083
    %v1416 = vpack.c.b16 %v1088, %v1084
    %v1417 = vpack.c.b16 %v1093, %v1089
    %v1418 = vpack.c.b16 %v1094, %v1090
    %v1419 = vpack.c.b16 %v1095, %v1091
    %v1420 = vpack.c.b16 %v1096, %v1092
    %v1421 = vpack.c.b16 %v1101, %v1097
    %v1422 = vpack.c.b16 %v1102, %v1098
    %v1423 = vpack.c.b16 %v1103, %v1099
    %v1424 = vpack.c.b16 %v1104, %v1100
    %v1425 = vpack.c.b16 %v1109, %v1105
    %v1426 = vpack.c.b16 %v1110, %v1106
    %v1427 = vpack.c.b16 %v1111, %v1107
    %v1428 = vpack.c.b16 %v1112, %v1108
    %v1429 = vpack.c.b16 %v1117, %v1113
    %v1430 = vpack.c.b16 %v1118, %v1114
    %v1431 = vpack.c.b16 %v1119, %v1115
    %v1432 = vpack.c.b16 %v1120, %v1116
    %v1433 = vpack.c.b16 %v1125, %v1121
    %v1434 = vpack.c.b16 %v1126, %v1122
    %v1435 = vpack.c.b16 %v1127, %v1123
    %v1436 = vpack.c.b16 %v1128, %v1124
    %v1437 = vpack.c.b16 %v1133, %v1129
    %v1438 = vpack.c.b16 %v1134, %v1130
    %v1439 = vpack.c.b16 %v1135, %v1131
    %v1440 = vpack.c.b16 %v1136, %v1132
    %v1441 = vpack.c.b16 %v1141, %v1137
    %v1442 = vpack.c.b16 %v1142, %v1138
    %v1443 = vpack.c.b16 %v1143, %v1139
    %v1444 = vpack.c.b16 %v1144, %v1140
    %v1445 = vpack.c.b16 %v1149, %v1145
    %v1446 = vpack.c.b16 %v1150, %v1146
    %v1447 = vpack.c.b16 %v1151, %v1147
    %v1448 = vpack.c.b16 %v1152, %v1148
    %v1449 = vpack.c.b16 %v1157, %v1153
    %v1450 = vpack.c.b16 %v1158, %v1154
    %v1451 = vpack.c.b16 %v1159, %v1155
    %v1452 = vpack.c.b16 %v1160, %v1156
    %v1453 = vpack.c.b16 %v1165, %v1161
    %v1454 = vpack.c.b16 %v1166, %v1162
    %v1455 = vpack.c.b16 %v1167, %v1163
    %v1456 = vpack.c.b16 %v1168, %v1164
    %v1457 = vpack.c.b16 %v1173, %v1169
    %v1458 = vpack.c.b16 %v1174, %v1170
    %v1459 = vpack.c.b16 %v1175, %v1171
    %v1460 = vpack.c.b16 %v1176, %v1172
    %v1461 = vpack.c.b16 %v1181, %v1177
    %v1462 = vpack.c.b16 %v1182, %v1178
    %v1463 = vpack.c.b16 %v1183, %v1179
    %v1464 = vpack.c.b16 %v1184, %v1180
    %v1465 = vpack.c.b16 %v1189, %v1185
    %v1466 = vpack.c.b16 %v1190, %v1186
    %v1467 = vpack.c.b16 %v1191, %v1187
    %v1468 = vpack.c.b16 %v1192, %v1188
    %v1469 = vpack.c.b16 %v1197, %v1193
    %v1470 = vpack.c.b16 %v1198, %v1194
    %v1471 = vpack.c.b16 %v1199, %v1195
    %v1472 = vpack.c.b16 %v1200, %v1196
    %v1473 = vpack.c.b16 %v1205, %v1201
    %v1474 = vpack.c.b16 %v1206, %v1202
    %v1475 = vpack.c.b16 %v1207, %v1203
    %v1476 = vpack.c.b16 %v1208, %v1204
    %v1477 = vpack.c.b16 %v1213, %v1209
    %v1478 = vpack.c.b16 %v1214, %v1210
    %v1479 = vpack.c.b16 %v1215, %v1211
    %v1480 = vpack.c.b16 %v1216, %v1212
    %v1481 = vpack.c.b16 %v1221, %v1217
    %v1482 = vpack.c.b16 %v1222, %v1218
    %v1483 = vpack.c.b16 %v1223, %v1219
    %v1484 = vpack.c.b16 %v1224, %v1220
    %v1485 = vpack.c.b16 %v1229, %v1225
    %v1486 = vpack.c.b16 %v1230, %v1226
    %v1487 = vpack.c.b16 %v1231, %v1227
    %v1488 = vpack.c.b16 %v1232, %v1228
    %v1489 = vpack.c.b16 %v1237, %v1233
    %v1490 = vpack.c.b16 %v1238, %v1234
    %v1491 = vpack.c.b16 %v1239, %v1235
    %v1492 = vpack.c.b16 %v1240, %v1236
    %v1493 = vpack.c.b16 %v1245, %v1241
    %v1494 = vpack.c.b16 %v1246, %v1242
    %v1495 = vpack.c.b16 %v1247, %v1243
    %v1496 = vpack.c.b16 %v1248, %v1244
    %v1497 = vpack.c.b16 %v1253, %v1249
    %v1498 = vpack.c.b16 %v1254, %v1250
    %v1499 = vpack.c.b16 %v1255, %v1251
    %v1500 = vpack.c.b16 %v1256, %v1252
    %v1501 = vpack.c.b16 %v1261, %v1257
    %v1502 = vpack.c.b16 %v1262, %v1258
    %v1503 = vpack.c.b16 %v1263, %v1259
    %v1504 = vpack.c.b16 %v1264, %v1260
    %v1505 = vpack.c.b16 %v1269, %v1265
    %v1506 = vpack.c.b16 %v1270, %v1266
    %v1507 = vpack.c.b16 %v1271, %v1267
    %v1508 = vpack.c.b16 %v1272, %v1268
    %v1509 = vpack.c.b16 %v1277, %v1273
    %v1510 = vpack.c.b16 %v1278, %v1274
    %v1511 = vpack.c.b16 %v1279, %v1275
    %v1512 = vpack.c.b16 %v1280, %v1276
    %v1513 = vpack.c.b16 %v1285, %v1281
    %v1514 = vpack.c.b16 %v1286, %v1282
    %v1515 = vpack.c.b16 %v1287, %v1283
    %v1516 = vpack.c.b16 %v1288, %v1284
    %v1517 = vpack.c.b16 %v1293, %v1289
    %v1518 = vpack.c.b16 %v1294, %v1290
    %v1519 = vpack.c.b16 %v1295, %v1291
    %v1520 = vpack.c.b16 %v1296, %v1292
    %v1521 = vpack.c.b16 %v1301, %v1297
    %v1522 = vpack.c.b16 %v1302, %v1298
    %v1523 = vpack.c.b16 %v1303, %v1299
    %v1524 = vpack.c.b16 %v1304, %v1300
    %vm1745 = vcmask 916480
    %v1747 = vsel %vm1745, %v402, 0
    %1749 = vmatprep.subr.bf16.mxu0 %v1306
    %1750 = vmatpush1.bf16.msra.mxu0 %v1305
    %1751 = vmatprep.subr.bf16.mxu0 %v1310
    %1752 = vmatpush1.bf16.msra.mxu0 %v1309
    %1753 = vmatprep.subr.bf16.mxu0 %v1314
    %1754 = vmatpush1.bf16.msra.mxu0 %v1313
    %1755 = vmatprep.subr.bf16.mxu0 %v1318
    %1756 = vmatpush1.bf16.msra.mxu0 %v1317
    %1757 = vmatprep.subr.bf16.mxu0 %v1322
    %1758 = vmatpush1.bf16.msra.mxu0 %v1321
    %1759 = vmatprep.subr.bf16.mxu0 %v1326
    %1760 = vmatpush1.bf16.msra.mxu0 %v1325
    %1761 = vmatprep.subr.bf16.mxu0 %v1330
    %1762 = vmatpush1.bf16.msra.mxu0 %v1329
    %1763 = vmatprep.subr.bf16.mxu0 %v1334
    %1764 = vmatpush1.bf16.msra.mxu0 %v1333
    %1765 = vmatprep.subr.bf16.mxu0 %v1338
    %1766 = vmatpush1.bf16.msra.mxu0 %v1337
    %1767 = vmatprep.subr.bf16.mxu0 %v1342
    %1768 = vmatpush1.bf16.msra.mxu0 %v1341
    %1769 = vmatprep.subr.bf16.mxu0 %v1346
    %1770 = vmatpush1.bf16.msra.mxu0 %v1345
    %1771 = vmatprep.subr.bf16.mxu0 %v1350
    %1772 = vmatpush1.bf16.msra.mxu0 %v1349
    %1773 = vmatprep.subr.bf16.mxu0 %v1354
    %1774 = vmatpush1.bf16.msra.mxu0 %v1353
    %1775 = vmatprep.subr.bf16.mxu0 %v1358
    %1776 = vmatpush1.bf16.msra.mxu0 %v1357
    %1777 = vmatprep.subr.bf16.mxu0 %v1362
    %1778 = vmatpush1.bf16.msra.mxu0 %v1361
    %1779 = vmatprep.subr.bf16.mxu0 %v1366
    %1780 = vmatpush1.bf16.msra.mxu0 %v1365
    %1781 = vmatprep.mubr.bf16.mxu0 %v397
    %1782 = vmatmul.mubr.bf16.gmra.mrb[0].mxu0 %v396
    %v1783 = vpop.f32.mrb[0].mxu0
    %v1784 = vadd.f32 %v628, %v1783
    %v1785 = vpop.f32.mrb[0].mxu0
    %v1786 = vadd.f32 %v632, %v1785
    %v1787 = vpop.f32.mrb[0].mxu0
    %v1788 = vpop.f32.mrb[0].mxu0
    %1789 = vdwg.mxu0
    %1790 = vmatprep.subr.bf16.mxu0 %v1370
    %1791 = vmatpush1.bf16.msra.mxu0 %v1369
    %1792 = vmatprep.subr.bf16.mxu0 %v1374
    %1793 = vmatpush1.bf16.msra.mxu0 %v1373
    %1794 = vmatprep.subr.bf16.mxu0 %v1378
    %1795 = vmatpush1.bf16.msra.mxu0 %v1377
    %1796 = vmatprep.subr.bf16.mxu0 %v1382
    %1797 = vmatpush1.bf16.msra.mxu0 %v1381
    %1798 = vmatprep.subr.bf16.mxu0 %v1386
    %1799 = vmatpush1.bf16.msra.mxu0 %v1385
    %1800 = vmatprep.subr.bf16.mxu0 %v1390
    %1801 = vmatpush1.bf16.msra.mxu0 %v1389
    %1802 = vmatprep.subr.bf16.mxu0 %v1394
    %1803 = vmatpush1.bf16.msra.mxu0 %v1393
    %1804 = vmatprep.subr.bf16.mxu0 %v1398
    %1805 = vmatpush1.bf16.msra.mxu0 %v1397
    %1806 = vmatprep.subr.bf16.mxu0 %v1402
    %1807 = vmatpush1.bf16.msra.mxu0 %v1401
    %1808 = vmatprep.subr.bf16.mxu0 %v1406
    %1809 = vmatpush1.bf16.msra.mxu0 %v1405
    %1810 = vmatprep.subr.bf16.mxu0 %v1410
    %1811 = vmatpush1.bf16.msra.mxu0 %v1409
    %1812 = vmatprep.subr.bf16.mxu0 %v1414
    %1813 = vmatpush1.bf16.msra.mxu0 %v1413
    %1814 = vmatprep.subr.bf16.mxu0 %v1418
    %1815 = vmatpush1.bf16.msra.mxu0 %v1417
    %1816 = vmatprep.subr.bf16.mxu0 %v1422
    %1817 = vmatpush1.bf16.msra.mxu0 %v1421
    %1818 = vmatprep.subr.bf16.mxu0 %v1426
    %1819 = vmatpush1.bf16.msra.mxu0 %v1425
    %1820 = vmatprep.subr.bf16.mxu0 %v1430
    %1821 = vmatpush1.bf16.msra.mxu0 %v1429
    %1822 = vmatprep.mubr.bf16.mxu0 %v399
    %1823 = vmatmul.mubr.bf16.gmra.mrb[0].mxu0 %v398
    %v1824 = vpop.f32.mrb[0].mxu0
    %v1825 = vadd.f32 %v1784, %v1824
    %v1826 = vpop.f32.mrb[0].mxu0
    %v1827 = vadd.f32 %v1786, %v1826
    %v1828 = vpop.f32.mrb[0].mxu0
    %v1829 = vpop.f32.mrb[0].mxu0
    %1830 = vdwg.mxu0
    %1831 = vmatprep.subr.bf16.mxu0 %v1434
    %1832 = vmatpush1.bf16.msra.mxu0 %v1433
    %1833 = vmatprep.subr.bf16.mxu0 %v1438
    %1834 = vmatpush1.bf16.msra.mxu0 %v1437
    %1835 = vmatprep.subr.bf16.mxu0 %v1442
    %1836 = vmatpush1.bf16.msra.mxu0 %v1441
    %1837 = vmatprep.subr.bf16.mxu0 %v1446
    %1838 = vmatpush1.bf16.msra.mxu0 %v1445
    %1839 = vmatprep.subr.bf16.mxu0 %v1450
    %1840 = vmatpush1.bf16.msra.mxu0 %v1449
    %1841 = vmatprep.subr.bf16.mxu0 %v1454
    %1842 = vmatpush1.bf16.msra.mxu0 %v1453
    %1843 = vmatprep.subr.bf16.mxu0 %v1458
    %1844 = vmatpush1.bf16.msra.mxu0 %v1457
    %1845 = vmatprep.subr.bf16.mxu0 %v1462
    %1846 = vmatpush1.bf16.msra.mxu0 %v1461
    %1847 = vmatprep.subr.bf16.mxu0 %v1466
    %1848 = vmatpush1.bf16.msra.mxu0 %v1465
    %1849 = vmatprep.subr.bf16.mxu0 %v1470
    %1850 = vmatpush1.bf16.msra.mxu0 %v1469
    %1851 = vmatprep.subr.bf16.mxu0 %v1474
    %1852 = vmatpush1.bf16.msra.mxu0 %v1473
    %1853 = vmatprep.subr.bf16.mxu0 %v1478
    %1854 = vmatpush1.bf16.msra.mxu0 %v1477
    %1855 = vmatprep.subr.bf16.mxu0 %v1482
    %1856 = vmatpush1.bf16.msra.mxu0 %v1481
    %1857 = vmatprep.subr.bf16.mxu0 %v1486
    %1858 = vmatpush1.bf16.msra.mxu0 %v1485
    %1859 = vmatprep.subr.bf16.mxu0 %v1490
    %1860 = vmatpush1.bf16.msra.mxu0 %v1489
    %1861 = vmatprep.subr.bf16.mxu0 %v1494
    %1862 = vmatpush1.bf16.msra.mxu0 %v1493
    %1863 = vmatprep.mubr.bf16.mxu0 %v401
    %1864 = vmatmul.mubr.bf16.gmra.mrb[0].mxu0 %v400
    %v1865 = vpop.f32.mrb[0].mxu0
    %v1866 = vadd.f32 %v1825, %v1865
    %v1867 = vpop.f32.mrb[0].mxu0
    %v1868 = vadd.f32 %v1827, %v1867
    %v1869 = vpop.f32.mrb[0].mxu0
    %v1870 = vpop.f32.mrb[0].mxu0
    %1871 = vdwg.mxu0
    %1872 = vmatprep.subr.bf16.mxu0 %v1498
    %1873 = vmatpush1.bf16.msra.mxu0 %v1497
    %1874 = vmatprep.subr.bf16.mxu0 %v1502
    %1875 = vmatpush1.bf16.msra.mxu0 %v1501
    %1876 = vmatprep.subr.bf16.mxu0 %v1506
    %1877 = vmatpush1.bf16.msra.mxu0 %v1505
    %1878 = vmatprep.subr.bf16.mxu0 %v1510
    %1879 = vmatpush1.bf16.msra.mxu0 %v1509
    %1880 = vmatprep.subr.bf16.mxu0 %v1514
    %1881 = vmatpush1.bf16.msra.mxu0 %v1513
    %1882 = vmatprep.subr.bf16.mxu0 %v1518
    %1883 = vmatpush1.bf16.msra.mxu0 %v1517
    %1884 = vmatprep.subr.bf16.mxu0 %v1522
    %1885 = vmatpush1.bf16.msra.mxu0 %v1521
    %1886 = vmatprep.subr.bf16.mxu0 0
    %1887 = vmatpush1.bf16.msra.mxu0 0
    %1888 = vmatprep.subr.bf16.mxu0 0
    %1889 = vmatpush1.bf16.msra.mxu0 0
    %1890 = vmatprep.subr.bf16.mxu0 0
    %1891 = vmatpush1.bf16.msra.mxu0 0
    %1892 = vmatprep.subr.bf16.mxu0 0
    %1893 = vmatpush1.bf16.msra.mxu0 0
    %1894 = vmatprep.subr.bf16.mxu0 0
    %1895 = vmatpush1.bf16.msra.mxu0 0
    %1896 = vmatprep.subr.bf16.mxu0 0
    %1897 = vmatpush1.bf16.msra.mxu0 0
    %1898 = vmatprep.subr.bf16.mxu0 0
    %1899 = vmatpush1.bf16.msra.mxu0 0
    %1900 = vmatprep.subr.bf16.mxu0 0
    %1901 = vmatpush1.bf16.msra.mxu0 0
    %1902 = vmatprep.subr.bf16.mxu0 0
    %1903 = vmatpush1.bf16.msra.mxu0 0
    %1904 = vmatprep.mubr.bf16.mxu0 0
    %1905 = vmatmul.mubr.bf16.gmra.mrb[0].mxu0 %v1747
    %v1906 = vpop.f32.mrb[0].mxu0
    %v1907 = vadd.f32 %v1866, %v1906
    %v1908 = vpop.f32.mrb[0].mxu0
    %v1909 = vadd.f32 %v1868, %v1908
    %v1910 = vpop.f32.mrb[0].mxu0
    %v1911 = vpop.f32.mrb[0].mxu0
    %1912 = vdwg.mxu0
    %1913 = vmatprep.subr.bf16.mxu0 %v1308
    %1914 = vmatpush1.bf16.msra.mxu0 %v1307
    %1915 = vmatprep.subr.bf16.mxu0 %v1312
    %1916 = vmatpush1.bf16.msra.mxu0 %v1311
    %1917 = vmatprep.subr.bf16.mxu0 %v1316
    %1918 = vmatpush1.bf16.msra.mxu0 %v1315
    %1919 = vmatprep.subr.bf16.mxu0 %v1320
    %1920 = vmatpush1.bf16.msra.mxu0 %v1319
    %1921 = vmatprep.subr.bf16.mxu0 %v1324
    %1922 = vmatpush1.bf16.msra.mxu0 %v1323
    %1923 = vmatprep.subr.bf16.mxu0 %v1328
    %1924 = vmatpush1.bf16.msra.mxu0 %v1327
    %1925 = vmatprep.subr.bf16.mxu0 %v1332
    %1926 = vmatpush1.bf16.msra.mxu0 %v1331
    %1927 = vmatprep.subr.bf16.mxu0 %v1336
    %1928 = vmatpush1.bf16.msra.mxu0 %v1335
    %1929 = vmatprep.subr.bf16.mxu0 %v1340
    %1930 = vmatpush1.bf16.msra.mxu0 %v1339
    %1931 = vmatprep.subr.bf16.mxu0 %v1344
    %1932 = vmatpush1.bf16.msra.mxu0 %v1343
    %1933 = vmatprep.subr.bf16.mxu0 %v1348
    %1934 = vmatpush1.bf16.msra.mxu0 %v1347
    %1935 = vmatprep.subr.bf16.mxu0 %v1352
    %1936 = vmatpush1.bf16.msra.mxu0 %v1351
    %1937 = vmatprep.subr.bf16.mxu0 %v1356
    %1938 = vmatpush1.bf16.msra.mxu0 %v1355
    %1939 = vmatprep.subr.bf16.mxu0 %v1360
    %1940 = vmatpush1.bf16.msra.mxu0 %v1359
    %1941 = vmatprep.subr.bf16.mxu0 %v1364
    %1942 = vmatpush1.bf16.msra.mxu0 %v1363
    %1943 = vmatprep.subr.bf16.mxu0 %v1368
    %1944 = vmatpush1.bf16.msra.mxu0 %v1367
    %1945 = vmatprep.mubr.bf16.mxu0 %v397
    %1946 = vmatmul.mubr.bf16.gmra.mrb[0].mxu0 %v396
    %v1947 = vpop.f32.mrb[0].mxu0
    %v1948 = vadd.f32 %v636, %v1947
    %v1949 = vpop.f32.mrb[0].mxu0
    %v1950 = vadd.f32 %v640, %v1949
    %v1951 = vpop.f32.mrb[0].mxu0
    %v1952 = vpop.f32.mrb[0].mxu0
    %1953 = vdwg.mxu0
    %1954 = vmatprep.subr.bf16.mxu0 %v1372
    %1955 = vmatpush1.bf16.msra.mxu0 %v1371
    %1956 = vmatprep.subr.bf16.mxu0 %v1376
    %1957 = vmatpush1.bf16.msra.mxu0 %v1375
    %1958 = vmatprep.subr.bf16.mxu0 %v1380
    %1959 = vmatpush1.bf16.msra.mxu0 %v1379
    %1960 = vmatprep.subr.bf16.mxu0 %v1384
    %1961 = vmatpush1.bf16.msra.mxu0 %v1383
    %1962 = vmatprep.subr.bf16.mxu0 %v1388
    %1963 = vmatpush1.bf16.msra.mxu0 %v1387
    %1964 = vmatprep.subr.bf16.mxu0 %v1392
    %1965 = vmatpush1.bf16.msra.mxu0 %v1391
    %1966 = vmatprep.subr.bf16.mxu0 %v1396
    %1967 = vmatpush1.bf16.msra.mxu0 %v1395
    %1968 = vmatprep.subr.bf16.mxu0 %v1400
    %1969 = vmatpush1.bf16.msra.mxu0 %v1399
    %1970 = vmatprep.subr.bf16.mxu0 %v1404
    %1971 = vmatpush1.bf16.msra.mxu0 %v1403
    %1972 = vmatprep.subr.bf16.mxu0 %v1408
    %1973 = vmatpush1.bf16.msra.mxu0 %v1407
    %1974 = vmatprep.subr.bf16.mxu0 %v1412
    %1975 = vmatpush1.bf16.msra.mxu0 %v1411
    %1976 = vmatprep.subr.bf16.mxu0 %v1416
    %1977 = vmatpush1.bf16.msra.mxu0 %v1415
    %1978 = vmatprep.subr.bf16.mxu0 %v1420
    %1979 = vmatpush1.bf16.msra.mxu0 %v1419
    %1980 = vmatprep.subr.bf16.mxu0 %v1424
    %1981 = vmatpush1.bf16.msra.mxu0 %v1423
    %1982 = vmatprep.subr.bf16.mxu0 %v1428
    %1983 = vmatpush1.bf16.msra.mxu0 %v1427
    %1984 = vmatprep.subr.bf16.mxu0 %v1432
    %1985 = vmatpush1.bf16.msra.mxu0 %v1431
    %1986 = vmatprep.mubr.bf16.mxu0 %v399
    %1987 = vmatmul.mubr.bf16.gmra.mrb[0].mxu0 %v398
    %v1988 = vpop.f32.mrb[0].mxu0
    %v1989 = vadd.f32 %v1948, %v1988
    %v1990 = vpop.f32.mrb[0].mxu0
    %v1991 = vadd.f32 %v1950, %v1990
    %v1992 = vpop.f32.mrb[0].mxu0
    %v1993 = vpop.f32.mrb[0].mxu0
    %1994 = vdwg.mxu0
    %1995 = vmatprep.subr.bf16.mxu0 %v1436
    %1996 = vmatpush1.bf16.msra.mxu0 %v1435
    %1997 = vmatprep.subr.bf16.mxu0 %v1440
    %1998 = vmatpush1.bf16.msra.mxu0 %v1439
    %1999 = vmatprep.subr.bf16.mxu0 %v1444
    %2000 = vmatpush1.bf16.msra.mxu0 %v1443
    %2001 = vmatprep.subr.bf16.mxu0 %v1448
    %2002 = vmatpush1.bf16.msra.mxu0 %v1447
    %2003 = vmatprep.subr.bf16.mxu0 %v1452
    %2004 = vmatpush1.bf16.msra.mxu0 %v1451
    %2005 = vmatprep.subr.bf16.mxu0 %v1456
    %2006 = vmatpush1.bf16.msra.mxu0 %v1455
    %2007 = vmatprep.subr.bf16.mxu0 %v1460
    %2008 = vmatpush1.bf16.msra.mxu0 %v1459
    %2009 = vmatprep.subr.bf16.mxu0 %v1464
    %2010 = vmatpush1.bf16.msra.mxu0 %v1463
    %2011 = vmatprep.subr.bf16.mxu0 %v1468
    %2012 = vmatpush1.bf16.msra.mxu0 %v1467
    %2013 = vmatprep.subr.bf16.mxu0 %v1472
    %2014 = vmatpush1.bf16.msra.mxu0 %v1471
    %2015 = vmatprep.subr.bf16.mxu0 %v1476
    %2016 = vmatpush1.bf16.msra.mxu0 %v1475
    %2017 = vmatprep.subr.bf16.mxu0 %v1480
    %2018 = vmatpush1.bf16.msra.mxu0 %v1479
    %2019 = vmatprep.subr.bf16.mxu0 %v1484
    %2020 = vmatpush1.bf16.msra.mxu0 %v1483
    %2021 = vmatprep.subr.bf16.mxu0 %v1488
    %2022 = vmatpush1.bf16.msra.mxu0 %v1487
    %2023 = vmatprep.subr.bf16.mxu0 %v1492
    %2024 = vmatpush1.bf16.msra.mxu0 %v1491
    %2025 = vmatprep.subr.bf16.mxu0 %v1496
    %2026 = vmatpush1.bf16.msra.mxu0 %v1495
    %2027 = vmatprep.mubr.bf16.mxu0 %v401
    %2028 = vmatmul.mubr.bf16.gmra.mrb[0].mxu0 %v400
    %v2029 = vpop.f32.mrb[0].mxu0
    %v2030 = vadd.f32 %v1989, %v2029
    %v2031 = vpop.f32.mrb[0].mxu0
    %v2032 = vadd.f32 %v1991, %v2031
    %v2033 = vpop.f32.mrb[0].mxu0
    %v2034 = vpop.f32.mrb[0].mxu0
    %2035 = vdwg.mxu0
    %2036 = vmatprep.subr.bf16.mxu0 %v1500
    %2037 = vmatpush1.bf16.msra.mxu0 %v1499
    %2038 = vmatprep.subr.bf16.mxu0 %v1504
    %2039 = vmatpush1.bf16.msra.mxu0 %v1503
    %2040 = vmatprep.subr.bf16.mxu0 %v1508
    %2041 = vmatpush1.bf16.msra.mxu0 %v1507
    %2042 = vmatprep.subr.bf16.mxu0 %v1512
    %2043 = vmatpush1.bf16.msra.mxu0 %v1511
    %2044 = vmatprep.subr.bf16.mxu0 %v1516
    %2045 = vmatpush1.bf16.msra.mxu0 %v1515
    %2046 = vmatprep.subr.bf16.mxu0 %v1520
    %2047 = vmatpush1.bf16.msra.mxu0 %v1519
    %2048 = vmatprep.subr.bf16.mxu0 %v1524
    %2049 = vmatpush1.bf16.msra.mxu0 %v1523
    %2050 = vmatprep.subr.bf16.mxu0 0
    %2051 = vmatpush1.bf16.msra.mxu0 0
    %2052 = vmatprep.subr.bf16.mxu0 0
    %2053 = vmatpush1.bf16.msra.mxu0 0
    %2054 = vmatprep.subr.bf16.mxu0 0
    %2055 = vmatpush1.bf16.msra.mxu0 0
    %2056 = vmatprep.subr.bf16.mxu0 0
    %2057 = vmatpush1.bf16.msra.mxu0 0
    %2058 = vmatprep.subr.bf16.mxu0 0
    %2059 = vmatpush1.bf16.msra.mxu0 0
    %2060 = vmatprep.subr.bf16.mxu0 0
    %2061 = vmatpush1.bf16.msra.mxu0 0
    %2062 = vmatprep.subr.bf16.mxu0 0
    %2063 = vmatpush1.bf16.msra.mxu0 0
    %2064 = vmatprep.subr.bf16.mxu0 0
    %2065 = vmatpush1.bf16.msra.mxu0 0
    %2066 = vmatprep.subr.bf16.mxu0 0
    %2067 = vmatpush1.bf16.msra.mxu0 0
    %2068 = vmatprep.mubr.bf16.mxu0 0
    %2069 = vmatmul.mubr.bf16.gmra.mrb[0].mxu0 %v1747
    %v2070 = vpop.f32.mrb[0].mxu0
    %v2071 = vadd.f32 %v2030, %v2070
    %v2072 = vpop.f32.mrb[0].mxu0
    %v2073 = vadd.f32 %v2032, %v2072
    %v2074 = vpop.f32.mrb[0].mxu0
    %v2075 = vpop.f32.mrb[0].mxu0
    %2076 = vdwg.mxu0
    %v2077 = vmax.f32 %v1907, 0.0
    %v2078 = vmax.f32 %v1909, 0.0
    %v2079 = vmax.f32 %v2071, 0.0
    %v2080 = vmax.f32 %v2073, 0.0
    %v2081 = vpack.c.bf16 %v2077, %v2077
    %v2082 = vpack.c.bf16 %v2078, %v2078
    %v2083 = vpack.c.bf16 %v2079, %v2079
    %v2084 = vpack.c.bf16 %v2080, %v2080
    %v2085 = vld [vmem:[#allocation5] sm:$0xf]
    %v2086 = vld [vmem:[#allocation5 + $0x4] sm:$0xf]
    %v2087 = vld [vmem:[#allocation5 + $0x8] sm:$0xf]
    %v2088 = vld [vmem:[#allocation5 + $0xc] sm:$0xf]
    %v2089 = vld [vmem:[#allocation5 + $0x10] sm:$0xf]
    %v2090 = vld [vmem:[#allocation5 + $0x14] sm:$0xf]
    %v2091 = vld [vmem:[#allocation5 + $0x18] sm:$0xf]
    %v2092 = vld [vmem:[#allocation5 + $0x1c] sm:$0xf]
    %v2093 = vld [vmem:[#allocation5 + $0x20] sm:$0xf]
    %v2094 = vld [vmem:[#allocation5 + $0x24] sm:$0xf]
    %v2095 = vld [vmem:[#allocation5 + $0x28] sm:$0xf]
    %v2096 = vld [vmem:[#allocation5 + $0x2c] sm:$0xf]
    %v2097 = vld [vmem:[#allocation5 + $0x30] sm:$0xf]
    %v2098 = vld [vmem:[#allocation5 + $0x34] sm:$0xf]
    %v2099 = vld [vmem:[#allocation5 + $0x38] sm:$0xf]
    %v2100 = vld [vmem:[#allocation5 + $0x3c] sm:$0xf]
    %v2101 = vld [vmem:[#allocation5 + $0x40] sm:$0xf]
    %v2102 = vld [vmem:[#allocation5 + $0x44] sm:$0xf]
    %v2103 = vld [vmem:[#allocation5 + $0x48] sm:$0xf]
    %v2104 = vld [vmem:[#allocation5 + $0x4c] sm:$0xf]
    %v2105 = vld [vmem:[#allocation5 + $0x50] sm:$0xf]
    %v2106 = vld [vmem:[#allocation5 + $0x54] sm:$0xf]
    %v2107 = vld [vmem:[#allocation5 + $0x58] sm:$0xf]
    %v2108 = vld [vmem:[#allocation5 + $0x5c] sm:$0xf]
    %v2109 = vld [vmem:[#allocation5 + $0x60] sm:$0xf]
    %v2110 = vld [vmem:[#allocation5 + $0x64] sm:$0xf]
    %v2111 = vld [vmem:[#allocation5 + $0x68] sm:$0xf]
    %v2112 = vld [vmem:[#allocation5 + $0x6c] sm:$0xf]
    %v2113 = vld [vmem:[#allocation5 + $0x70] sm:$0xf]
    %v2114 = vld [vmem:[#allocation5 + $0x74] sm:$0xf]
    %v2115 = vld [vmem:[#allocation5 + $0x78] sm:$0xf]
    %v2116 = vld [vmem:[#allocation5 + $0x7c] sm:$0xf]
    %v2117 = vld [vmem:[#allocation5 + $0x80] sm:$0xf]
    %v2118 = vld [vmem:[#allocation5 + $0x84] sm:$0xf]
    %v2119 = vld [vmem:[#allocation5 + $0x88] sm:$0xf]
    %v2120 = vld [vmem:[#allocation5 + $0x8c] sm:$0xf]
    %v2121 = vld [vmem:[#allocation5 + $0x90] sm:$0xf]
    %v2122 = vld [vmem:[#allocation5 + $0x94] sm:$0xf]
    %v2123 = vld [vmem:[#allocation5 + $0x98] sm:$0xf]
    %v2124 = vld [vmem:[#allocation5 + $0x9c] sm:$0xf]
    %v2125 = vld [vmem:[#allocation5 + $0xa0] sm:$0xf]
    %v2126 = vld [vmem:[#allocation5 + $0xa4] sm:$0xf]
    %v2127 = vld [vmem:[#allocation5 + $0xa8] sm:$0xf]
    %v2128 = vld [vmem:[#allocation5 + $0xac] sm:$0xf]
    %v2129 = vld [vmem:[#allocation5 + $0xb0] sm:$0xf]
    %v2130 = vld [vmem:[#allocation5 + $0xb4] sm:$0xf]
    %v2131 = vld [vmem:[#allocation5 + $0xb8] sm:$0xf]
    %v2132 = vld [vmem:[#allocation5 + $0xbc] sm:$0xf]
    %v2133 = vld [vmem:[#allocation5 + $0xc0] sm:$0xf]
    %v2134 = vld [vmem:[#allocation5 + $0xc4] sm:$0xf]
    %v2135 = vld [vmem:[#allocation5 + $0xc8] sm:$0xf]
    %v2136 = vld [vmem:[#allocation5 + $0xcc] sm:$0xf]
    %v2137 = vld [vmem:[#allocation5 + $0xd0] sm:$0xf]
    %v2138 = vld [vmem:[#allocation5 + $0xd4] sm:$0xf]
    %v2139 = vld [vmem:[#allocation5 + $0xd8] sm:$0xf]
    %v2140 = vld [vmem:[#allocation5 + $0xdc] sm:$0xf]
    %v2141 = vld [vmem:[#allocation5 + $0xe0] sm:$0xf]
    %v2142 = vld [vmem:[#allocation5 + $0xe4] sm:$0xf]
    %v2143 = vld [vmem:[#allocation5 + $0xe8] sm:$0xf]
    %v2144 = vld [vmem:[#allocation5 + $0xec] sm:$0xf]
    %v2145 = vld [vmem:[#allocation5 + $0xf0] sm:$0xf]
    %v2146 = vld [vmem:[#allocation5 + $0xf4] sm:$0xf]
    %v2147 = vld [vmem:[#allocation5 + $0xf8] sm:$0xf]
    %v2148 = vld [vmem:[#allocation5 + $0xfc] sm:$0xf]
    %v2149 = vld [vmem:[%s8] sm:$0x1]
    %v2151 = vlaneseq
    %v2152 = vshrl.u32 %v2151, 7
    %v2153 = vsub.s32 0, %v2152
    %v2154 = vrot.slane %v2149, %v2153
    %v2220 = vunpack.c.l.b16 %v2085
    %v2221 = vunpack.c.l.b16 %v2086
    %v2222 = vunpack.c.l.b16 %v2087
    %v2223 = vunpack.c.l.b16 %v2088
    %v2224 = vunpack.c.l.b16 %v2089
    %v2225 = vunpack.c.l.b16 %v2090
    %v2226 = vunpack.c.l.b16 %v2091
    %v2227 = vunpack.c.l.b16 %v2092
    %v2228 = vunpack.c.l.b16 %v2093
    %v2229 = vunpack.c.l.b16 %v2094
    %v2230 = vunpack.c.l.b16 %v2095
    %v2231 = vunpack.c.l.b16 %v2096
    %v2232 = vunpack.c.l.b16 %v2097
    %v2233 = vunpack.c.l.b16 %v2098
    %v2234 = vunpack.c.l.b16 %v2099
    %v2235 = vunpack.c.l.b16 %v2100
    %v2236 = vunpack.c.l.b16 %v2101
    %v2237 = vunpack.c.l.b16 %v2102
    %v2238 = vunpack.c.l.b16 %v2103
    %v2239 = vunpack.c.l.b16 %v2104
    %v2240 = vunpack.c.l.b16 %v2105
    %v2241 = vunpack.c.l.b16 %v2106
    %v2242 = vunpack.c.l.b16 %v2107
    %v2243 = vunpack.c.l.b16 %v2108
    %v2244 = vunpack.c.l.b16 %v2109
    %v2245 = vunpack.c.l.b16 %v2110
    %v2246 = vunpack.c.l.b16 %v2111
    %v2247 = vunpack.c.l.b16 %v2112
    %v2248 = vunpack.c.l.b16 %v2113
    %v2249 = vunpack.c.l.b16 %v2114
    %v2250 = vunpack.c.l.b16 %v2115
    %v2251 = vunpack.c.l.b16 %v2116
    %v2252 = vunpack.c.l.b16 %v2117
    %v2253 = vunpack.c.l.b16 %v2118
    %v2254 = vunpack.c.l.b16 %v2119
    %v2255 = vunpack.c.l.b16 %v2120
    %v2256 = vunpack.c.l.b16 %v2121
    %v2257 = vunpack.c.l.b16 %v2122
    %v2258 = vunpack.c.l.b16 %v2123
    %v2259 = vunpack.c.l.b16 %v2124
    %v2260 = vunpack.c.l.b16 %v2125
    %v2261 = vunpack.c.l.b16 %v2126
    %v2262 = vunpack.c.l.b16 %v2127
    %v2263 = vunpack.c.l.b16 %v2128
    %v2264 = vunpack.c.l.b16 %v2129
    %v2265 = vunpack.c.l.b16 %v2130
    %v2266 = vunpack.c.l.b16 %v2131
    %v2267 = vunpack.c.l.b16 %v2132
    %v2268 = vunpack.c.l.b16 %v2133
    %v2269 = vunpack.c.l.b16 %v2134
    %v2270 = vunpack.c.l.b16 %v2135
    %v2271 = vunpack.c.l.b16 %v2136
    %v2272 = vunpack.c.l.b16 %v2137
    %v2273 = vunpack.c.l.b16 %v2138
    %v2274 = vunpack.c.l.b16 %v2139
    %v2275 = vunpack.c.l.b16 %v2140
    %v2276 = vunpack.c.l.b16 %v2141
    %v2277 = vunpack.c.l.b16 %v2142
    %v2278 = vunpack.c.l.b16 %v2143
    %v2279 = vunpack.c.l.b16 %v2144
    %v2280 = vunpack.c.l.b16 %v2145
    %v2281 = vunpack.c.l.b16 %v2146
    %v2282 = vunpack.c.l.b16 %v2147
    %v2283 = vunpack.c.l.b16 %v2148
    %v2284 = vpack.c.b16 %v2221, %v2220
    %v2285 = vpack.c.b16 %v2223, %v2222
    %v2286 = vpack.c.b16 %v2225, %v2224
    %v2287 = vpack.c.b16 %v2227, %v2226
    %v2288 = vpack.c.b16 %v2229, %v2228
    %v2289 = vpack.c.b16 %v2231, %v2230
    %v2290 = vpack.c.b16 %v2233, %v2232
    %v2291 = vpack.c.b16 %v2235, %v2234
    %v2292 = vpack.c.b16 %v2237, %v2236
    %v2293 = vpack.c.b16 %v2239, %v2238
    %v2294 = vpack.c.b16 %v2241, %v2240
    %v2295 = vpack.c.b16 %v2243, %v2242
    %v2296 = vpack.c.b16 %v2245, %v2244
    %v2297 = vpack.c.b16 %v2247, %v2246
    %v2298 = vpack.c.b16 %v2249, %v2248
    %v2299 = vpack.c.b16 %v2251, %v2250
    %v2300 = vpack.c.b16 %v2253, %v2252
    %v2301 = vpack.c.b16 %v2255, %v2254
    %v2302 = vpack.c.b16 %v2257, %v2256
    %v2303 = vpack.c.b16 %v2259, %v2258
    %v2304 = vpack.c.b16 %v2261, %v2260
    %v2305 = vpack.c.b16 %v2263, %v2262
    %v2306 = vpack.c.b16 %v2265, %v2264
    %v2307 = vpack.c.b16 %v2267, %v2266
    %v2308 = vpack.c.b16 %v2269, %v2268
    %v2309 = vpack.c.b16 %v2271, %v2270
    %v2310 = vpack.c.b16 %v2273, %v2272
    %v2311 = vpack.c.b16 %v2275, %v2274
    %v2312 = vpack.c.b16 %v2277, %v2276
    %v2313 = vpack.c.b16 %v2279, %v2278
    %v2314 = vpack.c.b16 %v2281, %v2280
    %v2315 = vpack.c.b16 %v2283, %v2282
    %2348 = vmatprep.subr.bf16.mxu0 0
    %2349 = vmatpush1.bf16.msra.mxu0 %v2284
    %2350 = vmatprep.subr.bf16.mxu0 0
    %2351 = vmatpush1.bf16.msra.mxu0 %v2285
    %2352 = vmatprep.subr.bf16.mxu0 0
    %2353 = vmatpush1.bf16.msra.mxu0 %v2286
    %2354 = vmatprep.subr.bf16.mxu0 0
    %2355 = vmatpush1.bf16.msra.mxu0 %v2287
    %2356 = vmatprep.subr.bf16.mxu0 0
    %2357 = vmatpush1.bf16.msra.mxu0 %v2288
    %2358 = vmatprep.subr.bf16.mxu0 0
    %2359 = vmatpush1.bf16.msra.mxu0 %v2289
    %2360 = vmatprep.subr.bf16.mxu0 0
    %2361 = vmatpush1.bf16.msra.mxu0 %v2290
    %2362 = vmatprep.subr.bf16.mxu0 0
    %2363 = vmatpush1.bf16.msra.mxu0 %v2291
    %2364 = vmatprep.subr.bf16.mxu0 0
    %2365 = vmatpush1.bf16.msra.mxu0 %v2292
    %2366 = vmatprep.subr.bf16.mxu0 0
    %2367 = vmatpush1.bf16.msra.mxu0 %v2293
    %2368 = vmatprep.subr.bf16.mxu0 0
    %2369 = vmatpush1.bf16.msra.mxu0 %v2294
    %2370 = vmatprep.subr.bf16.mxu0 0
    %2371 = vmatpush1.bf16.msra.mxu0 %v2295
    %2372 = vmatprep.subr.bf16.mxu0 0
    %2373 = vmatpush1.bf16.msra.mxu0 %v2296
    %2374 = vmatprep.subr.bf16.mxu0 0
    %2375 = vmatpush1.bf16.msra.mxu0 %v2297
    %2376 = vmatprep.subr.bf16.mxu0 0
    %2377 = vmatpush1.bf16.msra.mxu0 %v2298
    %2378 = vmatprep.subr.bf16.mxu0 0
    %2379 = vmatpush1.bf16.msra.mxu0 %v2299
    %2380 = vmatprep.mubr.bf16.mxu0 %v2082
    %2381 = vmatmul.mubr.bf16.gmra.mrb[0].mxu0 %v2081
    %v2382 = vpop.f32.mrb[0].mxu0
    %v2383 = vadd.f32 %v2154, %v2382
    %v2384 = vpop.f32.mrb[0].mxu0
    %v2385 = vpop.f32.mrb[0].mxu0
    %v2386 = vpop.f32.mrb[0].mxu0
    %2387 = vdwg.mxu0
    %2388 = vmatprep.subr.bf16.mxu0 0
    %2389 = vmatpush1.bf16.msra.mxu0 %v2300
    %2390 = vmatprep.subr.bf16.mxu0 0
    %2391 = vmatpush1.bf16.msra.mxu0 %v2301
    %2392 = vmatprep.subr.bf16.mxu0 0
    %2393 = vmatpush1.bf16.msra.mxu0 %v2302
    %2394 = vmatprep.subr.bf16.mxu0 0
    %2395 = vmatpush1.bf16.msra.mxu0 %v2303
    %2396 = vmatprep.subr.bf16.mxu0 0
    %2397 = vmatpush1.bf16.msra.mxu0 %v2304
    %2398 = vmatprep.subr.bf16.mxu0 0
    %2399 = vmatpush1.bf16.msra.mxu0 %v2305
    %2400 = vmatprep.subr.bf16.mxu0 0
    %2401 = vmatpush1.bf16.msra.mxu0 %v2306
    %2402 = vmatprep.subr.bf16.mxu0 0
    %2403 = vmatpush1.bf16.msra.mxu0 %v2307
    %2404 = vmatprep.subr.bf16.mxu0 0
    %2405 = vmatpush1.bf16.msra.mxu0 %v2308
    %2406 = vmatprep.subr.bf16.mxu0 0
    %2407 = vmatpush1.bf16.msra.mxu0 %v2309
    %2408 = vmatprep.subr.bf16.mxu0 0
    %2409 = vmatpush1.bf16.msra.mxu0 %v2310
    %2410 = vmatprep.subr.bf16.mxu0 0
    %2411 = vmatpush1.bf16.msra.mxu0 %v2311
    %2412 = vmatprep.subr.bf16.mxu0 0
    %2413 = vmatpush1.bf16.msra.mxu0 %v2312
    %2414 = vmatprep.subr.bf16.mxu0 0
    %2415 = vmatpush1.bf16.msra.mxu0 %v2313
    %2416 = vmatprep.subr.bf16.mxu0 0
    %2417 = vmatpush1.bf16.msra.mxu0 %v2314
    %2418 = vmatprep.subr.bf16.mxu0 0
    %2419 = vmatpush1.bf16.msra.mxu0 %v2315
    %2420 = vmatprep.mubr.bf16.mxu0 %v2084
    %2421 = vmatmul.mubr.bf16.gmra.mrb[0].mxu0 %v2083
    %v2422 = vpop.f32.mrb[0].mxu0
    %v2423 = vadd.f32 %v2383, %v2422
    %v2424 = vpop.f32.mrb[0].mxu0
    %v2425 = vpop.f32.mrb[0].mxu0
    %v2426 = vpop.f32.mrb[0].mxu0
    %2427 = vdwg.mxu0
    %v2428 = vmax.f32 %v2423, 0.0
    %v2429 = vpack.c.bf16 %v2428, %v2428
    %v2430 = vld [vmem:[%s9] sm:$0xf]
    %v2431 = vld [vmem:[%s9 + $0x4] sm:$0xf]
    %v2432 = vld [vmem:[%s9 + $0x8] sm:$0xf]
    %v2433 = vld [vmem:[%s9 + $0xc] sm:$0xf]
    %v2434 = vld [vmem:[%s9 + $0x10] sm:$0xf]
    %v2435 = vld [vmem:[%s9 + $0x14] sm:$0xf]
    %v2436 = vld [vmem:[%s9 + $0x18] sm:$0xf]
    %v2437 = vld [vmem:[%s9 + $0x1c] sm:$0xf]
    %v2438 = vld [vmem:[%s9 + $0x20] sm:$0xf]
    %v2439 = vld [vmem:[%s9 + $0x24] sm:$0xf]
    %v2440 = vld [vmem:[%s9 + $0x28] sm:$0xf]
    %v2441 = vld [vmem:[%s9 + $0x2c] sm:$0xf]
    %v2442 = vld [vmem:[%s9 + $0x30] sm:$0xf]
    %v2443 = vld [vmem:[%s9 + $0x34] sm:$0xf]
    %v2444 = vld [vmem:[%s9 + $0x38] sm:$0xf]
    %v2445 = vld [vmem:[%s9 + $0x3c] sm:$0xf]
    %v2446 = vld [vmem:[%s10] sm:$0x1]
    %v2448 = vlaneseq
    %v2449 = vshrl.u32 %v2448, 7
    %v2450 = vsub.s32 0, %v2449
    %v2451 = vrot.slane %v2446, %v2450
    %v2469 = vunpack.c.l.b16 %v2430
    %v2470 = vunpack.c.l.b16 %v2431
    %v2471 = vunpack.c.l.b16 %v2432
    %v2472 = vunpack.c.l.b16 %v2433
    %v2473 = vunpack.c.l.b16 %v2434
    %v2474 = vunpack.c.l.b16 %v2435
    %v2475 = vunpack.c.l.b16 %v2436
    %v2476 = vunpack.c.l.b16 %v2437
    %v2477 = vunpack.c.l.b16 %v2438
    %v2478 = vunpack.c.l.b16 %v2439
    %v2479 = vunpack.c.l.b16 %v2440
    %v2480 = vunpack.c.l.b16 %v2441
    %v2481 = vunpack.c.l.b16 %v2442
    %v2482 = vunpack.c.l.b16 %v2443
    %v2483 = vunpack.c.l.b16 %v2444
    %v2484 = vunpack.c.l.b16 %v2445
    %v2485 = vpack.c.b16 %v2470, %v2469
    %v2486 = vpack.c.b16 %v2472, %v2471
    %v2487 = vpack.c.b16 %v2474, %v2473
    %v2488 = vpack.c.b16 %v2476, %v2475
    %v2489 = vpack.c.b16 %v2478, %v2477
    %v2490 = vpack.c.b16 %v2480, %v2479
    %v2491 = vpack.c.b16 %v2482, %v2481
    %v2492 = vpack.c.b16 %v2484, %v2483
    %2501 = vmatprep.subr.bf16.mxu0 0
    %2502 = vmatpush1.bf16.msra.mxu0 %v2485
    %2503 = vmatprep.subr.bf16.mxu0 0
    %2504 = vmatpush1.bf16.msra.mxu0 %v2486
    %2505 = vmatprep.subr.bf16.mxu0 0
    %2506 = vmatpush1.bf16.msra.mxu0 %v2487
    %2507 = vmatprep.subr.bf16.mxu0 0
    %2508 = vmatpush1.bf16.msra.mxu0 %v2488
    %2509 = vmatprep.subr.bf16.mxu0 0
    %2510 = vmatpush1.bf16.msra.mxu0 %v2489
    %2511 = vmatprep.subr.bf16.mxu0 0
    %2512 = vmatpush1.bf16.msra.mxu0 %v2490
    %2513 = vmatprep.subr.bf16.mxu0 0
    %2514 = vmatpush1.bf16.msra.mxu0 %v2491
    %2515 = vmatprep.subr.bf16.mxu0 0
    %2516 = vmatpush1.bf16.msra.mxu0 %v2492
    %2517 = vmatprep.subr.bf16.mxu0 0
    %2518 = vmatpush1.bf16.msra.mxu0 0
    %2519 = vmatprep.subr.bf16.mxu0 0
    %2520 = vmatpush1.bf16.msra.mxu0 0
    %2521 = vmatprep.subr.bf16.mxu0 0
    %2522 = vmatpush1.bf16.msra.mxu0 0
    %2523 = vmatprep.subr.bf16.mxu0 0
    %2524 = vmatpush1.bf16.msra.mxu0 0
    %2525 = vmatprep.subr.bf16.mxu0 0
    %2526 = vmatpush1.bf16.msra.mxu0 0
    %2527 = vmatprep.subr.bf16.mxu0 0
    %2528 = vmatpush1.bf16.msra.mxu0 0
    %2529 = vmatprep.subr.bf16.mxu0 0
    %2530 = vmatpush1.bf16.msra.mxu0 0
    %2531 = vmatprep.subr.bf16.mxu0 0
    %2532 = vmatpush1.bf16.msra.mxu0 0
    %2533 = vmatprep.mubr.bf16.mxu0 0
    %2534 = vmatmul.mubr.bf16.gmra.mrb[0].mxu0 %v2429
    %v2535 = vpop.f32.mrb[0].mxu0
    %v2536 = vadd.f32 %v2451, %v2535
    %v2537 = vpop.f32.mrb[0].mxu0
    %v2538 = vpop.f32.mrb[0].mxu0
    %v2539 = vpop.f32.mrb[0].mxu0
    %2540 = vdwg.mxu0
    %v2541 = vmax.f32 %v2536, 0.0
    %v2542 = vld [vmem:[%s11] sm:$0x1]
    %v2544 = vlaneseq
    %v2545 = vshrl.u32 %v2544, 7
    %v2546 = vsub.s32 0, %v2545
    %v2547 = vrot.slane %v2542, %v2546
    %v2549 = vmul.f32 %v2541, %v2547
    %v2550 = vsel %vm164, %v2549, 0.0
    %2551 = vadd.xlane.f32.xlu0 %v2550
    %v2552 = vpop.xlane.xlu0 %2551
    %v2553 = vld [vmem:[#allocation2] sm:$0x1]
    %v2555 = vlaneseq
    %v2556 = vshrl.u32 %v2555, 7
    %v2557 = vsub.s32 0, %v2556
    %v2558 = vrot.slane %v2553, %v2557
    %v2560 = vadd.f32 %v2552, %v2558
    %vm2561 = vcmask 7168
    %2562 = vst.msk [vmem:[%s13] sm:$0xff] %vm2561, %v2560
    // Predicated region
    $region62: #{tpu_custom_call.1} parent=1 // pred_check
      _
    $region63: #{tpu_custom_call.1} parent=1 // pred_check_branch
      %2564 = sbr.rel (0) target = $region65
    $region64: #{tpu_custom_call.1} parent=1 // pred_region
      _
    $region65: #{tpu_custom_call.1} parent=1 // pred_fallthru
      _
    // Predicated region
    $region66: #{tpu_custom_call.1} parent=1 // pred_check
      _
    $region67: #{tpu_custom_call.1} parent=1 // pred_check_branch
      %2566 = sbr.rel (0) target = $region69
    $region68: #{tpu_custom_call.1} parent=1 // pred_region
      _
    $region69: #{tpu_custom_call.1} parent=1 // pred_fallthru
      _
    %2567 = vsyncpa [#allocation4], 1
    %2568 = vsyncpa [#allocation6], 1

</llo_original>
